<compile_context>
chip_gen: v6e
topology: v6e:2x2x1
jax: 0.10.0
libtpu: 0.0.40
codegen_flags: <defaults>
</compile_context>

<pallas_src>
import functools

import jax
import jax.numpy as jnp
from jax import lax
from jax.experimental import pallas as pl
from jax.experimental.pallas import tpu as pltpu


# ----------------------------------------------------------------------------- kernel
def basic_block_kernel(x_ref, w1_ref, s1_ref, b1_ref, w2_ref, s2_ref, b2_ref,
                       out_ref, *, H):
    """One batch-of-images block per grid step, lane-dense (B*H, W*C) layout.

    x_ref   : (B*H, WC) f32   unpadded input rows (also the residual)
    w*_ref  : (3, WC, WC) bf16 banded conv weights (one band per kernel row dy)
    s*/b*_ref: (1, WC) f32     folded BN scale / bias, tiled per lane
    out_ref : (B*H, WC) f32
    """
    BH, WC = out_ref.shape
    x = x_ref[...]                                     # (BH, WC) f32, lane dense

    # Row masks that zero the H-halo rows after the +-1 row rolls.  Because several images are
    # stacked along the row axis, the same masks also prevent leakage across image boundaries.
    # Computed once, reused by both convs.
    row = lax.broadcasted_iota(jnp.int32, (BH, WC), 0)
    not_top = (row % H) != 0           # dy=0 operand: row h reads row h-1 -> zero at h == 0
    not_bot = (row % H) != (H - 1)     # dy=2 operand: row h reads row h+1 -> zero at h == H-1

    def conv3x3_banded(a_f32, w_ref):
        # In-register XLU rolls replace the old padded-scratch store + 3 unaligned reloads.
        # Rolls are done in f32 (well-supported 32-bit sublane path); each distinct matmul
        # operand is cast to bf16 exactly once (3 casts/conv, negligible vs the MXU work).
        a_dn = jnp.where(not_top, pltpu.roll(a_f32, shift=1, axis=0), 0.0)
        a_up = jnp.where(not_bot, pltpu.roll(a_f32, shift=BH - 1, axis=0), 0.0)
        acc = jnp.dot(a_dn.astype(jnp.bfloat16), w_ref[0],
                      preferred_element_type=jnp.float32)
        acc = acc + jnp.dot(a_f32.astype(jnp.bfloat16), w_ref[1],
                            preferred_element_type=jnp.float32)
        acc = acc + jnp.dot(a_up.astype(jnp.bfloat16), w_ref[2],
                            preferred_element_type=jnp.float32)
        return acc

    # conv1 + bn1 + relu (f32 epilogue)
    out1 = jnp.maximum(conv3x3_banded(x, w1_ref) * s1_ref[...] + b1_ref[...], 0.0)
    # conv2 + bn2
    out2 = conv3x3_banded(out1, w2_ref) * s2_ref[...] + b2_ref[...]
    # residual (exact f32) + relu, unmasked full-lane store
    out_ref[...] = jnp.maximum(out2 + x, 0.0)


# ----------------------------------------------------------------------------- wrapper helpers
def _fold_bn(gamma, beta, running_mean, running_var, eps):
    scale = gamma / jnp.sqrt(running_var + eps)
    return scale, beta - running_mean * scale


def _band_weights(w_hwio, width):
    """(3, 3, Cin, Cout) HWIO weights -> (3, width*Cin, width*Cout) banded matmul operands.

    band[dy][(w_out + dx - 1)*Cin + ci, w_out*Cout + co] = w[dy, dx, ci, co]
    (rows with w_out + dx - 1 outside [0, width) are dropped -> zero padding along W).
    """
    kh, kw, cin, cout = w_hwio.shape
    eye_w = jnp.eye(width, dtype=jnp.float32)
    bands = []
    for dy in range(kh):
        b = jnp.zeros((width * cin, width * cout), jnp.float32)
        for dx in range(kw):
            blk = jnp.kron(eye_w, w_hwio[dy, dx].astype(jnp.float32))
            shift = (dx - 1) * cin
            if shift > 0:
                blk = jnp.concatenate(
                    [jnp.zeros((shift, width * cout), jnp.float32), blk[:-shift]], axis=0)
            elif shift < 0:
                blk = jnp.concatenate(
                    [blk[-shift:], jnp.zeros((-shift, width * cout), jnp.float32)], axis=0)
            b = b + blk
        bands.append(b)
    return jnp.stack(bands)


# ----------------------------------------------------------------------------- public entry
def basic_block(x_nchw, w1, g1, beta1, w2, g2, beta2,
                rm1=None, rv1=None, rm2=None, rv2=None,
                eps=1e-5, images_per_block=None):
    """BasicBlock forward. x_nchw: (N, C, H, W) float32 (PyTorch layout).

    w1, w2: (3, 3, Cin, Cout) HWIO conv weights.  rm*/rv*: BN running stats (default 0/1).
    """
    x_nchw = x_nchw.astype(jnp.float32)
    N, C, H, W = x_nchw.shape
    WC = W * C

    # Pick how many images share one grid step: target M = B*H >= 128 (fills the MXU M dim),
    # while keeping several grid steps when possible so v7x's two TCs both get work.
    if images_per_block is None:
        images_per_block = max(1, min(N, max(1, 128 // H)))
        while N % images_per_block:
            images_per_block -= 1
    assert N % images_per_block == 0, "N must be divisible by images_per_block"
    B = images_per_block
    BH = B * H
    grid = (N // B,)

    # NCHW -> NHWC -> lane-dense (N*H, W*C).  In a full NHWC network these edge transposes would
    # be folded into the surrounding graph instead of paid per block.
    x = jnp.transpose(x_nchw, (0, 2, 3, 1)).reshape(N * H, WC)

    if rm1 is None: rm1 = jnp.zeros((C,), jnp.float32)
    if rv1 is None: rv1 = jnp.ones((C,), jnp.float32)
    if rm2 is None: rm2 = jnp.zeros((C,), jnp.float32)
    if rv2 is None: rv2 = jnp.ones((C,), jnp.float32)
    s1c, b1c = _fold_bn(g1, beta1, rm1, rv1, eps)
    s2c, b2c = _fold_bn(g2, beta2, rm2, rv2, eps)
    # per-lane (index = w*C + c) scale / bias
    s1 = jnp.tile(s1c, W).reshape(1, WC).astype(jnp.float32)
    b1 = jnp.tile(b1c, W).reshape(1, WC).astype(jnp.float32)
    s2 = jnp.tile(s2c, W).reshape(1, WC).astype(jnp.float32)
    b2 = jnp.tile(b2c, W).reshape(1, WC).astype(jnp.float32)

    # banded conv weights, bf16 for the MXU
    w1b = _band_weights(w1, W).astype(jnp.bfloat16)
    w2b = _band_weights(w2, W).astype(jnp.bfloat16)

    def weight_spec():
        return pl.BlockSpec((3, WC, WC), lambda n: (0, 0, 0),
                            pipeline_mode=pl.Buffered(1))

    def vec_spec():
        return pl.BlockSpec((1, WC), lambda n: (0, 0),
                            pipeline_mode=pl.Buffered(1))

    flops = 12 * N * H * WC * WC                               # 2 convs x 3 bands
    bytes_accessed = 2 * N * H * WC * 4 + 2 * 3 * WC * WC * 2 + 4 * WC * 4

    out = pl.pallas_call(
        functools.partial(basic_block_kernel, H=H),
        out_shape=jax.ShapeDtypeStruct((N * H, WC), jnp.float32),
        grid_spec=pltpu.PrefetchScalarGridSpec(
            num_scalar_prefetch=0,
            grid=grid,
            in_specs=[
                pl.BlockSpec((BH, WC), lambda n: (n, 0)),      # x block (B images)
                weight_spec(), vec_spec(), vec_spec(),         # w1 bands, s1, b1
                weight_spec(), vec_spec(), vec_spec(),         # w2 bands, s2, b2
            ],
            out_specs=pl.BlockSpec((BH, WC), lambda n: (n, 0)),
        ),
        compiler_params=pltpu.CompilerParams(
            dimension_semantics=("parallel",),                 # megacore over blocks (v7x)
            vmem_limit_bytes=32 * 1024 * 1024),
        cost_estimate=pl.CostEstimate(flops=flops, transcendentals=0,
                                      bytes_accessed=bytes_accessed),
    )(x, w1b, s1, b1, w2b, s2, b2)

    return jnp.transpose(out.reshape(N, H, W, C), (0, 3, 1, 2))   # back to NCHW


# ----------------------------------------------------------------------------- reference
def _reference(x_nchw, w1, g1, beta1, rm1, rv1, w2, g2, beta2, rm2, rv2, eps=1e-5):
    """Pure-JAX reference: general eval-mode BN, bf16 conv operands, f32 accumulation."""
    x = jnp.transpose(x_nchw, (0, 2, 3, 1)).astype(jnp.float32)
    dn = lax.conv_dimension_numbers(x.shape, w1.shape, ("NHWC", "HWIO", "NHWC"))

    def conv(v, w):
        return lax.conv_general_dilated(
            v.astype(jnp.bfloat16), w.astype(jnp.bfloat16), (1, 1), "SAME",
            dimension_numbers=dn, preferred_element_type=jnp.float32)

    def bn(y, g, b, rm, rv):
        return (y - rm) * (g / jnp.sqrt(rv + eps)) + b

    o = jnp.maximum(bn(conv(x, w1), g1, beta1, rm1, rv1), 0.0)
    o = bn(conv(o, w2), g2, beta2, rm2, rv2)
    o = jnp.maximum(o + x, 0.0)
    return jnp.transpose(o, (0, 3, 1, 2))


# ----------------------------------------------------------------------------- demo / check
if __name__ == "__main__":
    # inplanes = planes = 8, stride = 1, downsample = None.
    # W*C = 128 -> one full lane tile; images_per_block = 8 -> M = 128 rows per banded matmul;
    # grid = (2,) so both v7x TensorCores get a block (single-TC v5e/v6e just run 2 fat steps).
    N, C, H, W = 16, 8, 16, 16
    key = jax.random.PRNGKey(0)
    (kx, kw1, kw2, kg1, kb1, kg2, kb2, km1, kv1, km2, kv2) = jax.random.split(key, 11)

    x = jax.random.normal(kx, (N, C, H, W), jnp.float32)

    # conv weights generated directly in HWIO (PyTorch stores OIHW)
    fan_in = C * 3 * 3
    w1 = jax.random.normal(kw1, (3, 3, C, C), jnp.float32) * (2.0 / fan_in) ** 0.5
    w2 = jax.random.normal(kw2, (3, 3, C, C), jnp.float32) * (2.0 / fan_in) ** 0.5

    # BatchNorm affine params and NON-default running stats (exercise the general fold)
    g1 = 1.0 + 0.3 * jax.random.normal(kg1, (C,), jnp.float32)
    beta1 = 0.1 * jax.random.normal(kb1, (C,), jnp.float32)
    g2 = 1.0 + 0.3 * jax.random.normal(kg2, (C,), jnp.float32)
    beta2 = 0.1 * jax.random.normal(kb2, (C,), jnp.float32)
    rm1 = 0.2 * jax.random.normal(km1, (C,), jnp.float32)
    rv1 = 0.5 + jax.random.uniform(kv1, (C,), jnp.float32)
    rm2 = 0.2 * jax.random.normal(km2, (C,), jnp.float32)
    rv2 = 0.5 + jax.random.uniform(kv2, (C,), jnp.float32)

    out = jax.block_until_ready(
        basic_block(x, w1, g1, beta1, w2, g2, beta2, rm1, rv1, rm2, rv2,
                    images_per_block=8))
    ref = jax.block_until_ready(
        _reference(x, w1, g1, beta1, rm1, rv1, w2, g2, beta2, rm2, rv2))

    assert out.shape == (N, C, H, W)
    max_err = float(jnp.max(jnp.abs(out - ref)))
    assert max_err < 2e-2, f"max abs err {max_err}"   # bf16-operand conv tolerance

    print("KERNEL_OK")
</pallas_src>

<mosaic_0001>
module attributes {stable_mosaic.version = 11 : i64} {
  func.func @basic_block_kernel(%arg0: i32, %arg1: memref<128x128xf32, #tpu.memory_space<vmem>>, %arg2: memref<3x128x128xbf16, #tpu.memory_space<vmem>>, %arg3: memref<1x128xf32, #tpu.memory_space<vmem>>, %arg4: memref<1x128xf32, #tpu.memory_space<vmem>>, %arg5: memref<3x128x128xbf16, #tpu.memory_space<vmem>>, %arg6: memref<1x128xf32, #tpu.memory_space<vmem>>, %arg7: memref<1x128xf32, #tpu.memory_space<vmem>>, %arg8: memref<128x128xf32, #tpu.memory_space<vmem>>) attributes {dimension_semantics = [#tpu.dimension_semantics<parallel>], iteration_bounds = array<i64: 2>, scalar_prefetch = 0 : i64, scratch_operands = 0 : i64, tpu.core_type = #tpu.core_type<tc>, window_params = [{transform_indices = @transform_0, window_bounds = array<i64: 128, 128>}, {pipeline_mode = #tpu.pipeline_mode<synchronous>, transform_indices = @transform_1, window_bounds = array<i64: 3, 128, 128>}, {pipeline_mode = #tpu.pipeline_mode<synchronous>, transform_indices = @transform_2, window_bounds = array<i64: 1, 128>}, {pipeline_mode = #tpu.pipeline_mode<synchronous>, transform_indices = @transform_3, window_bounds = array<i64: 1, 128>}, {pipeline_mode = #tpu.pipeline_mode<synchronous>, transform_indices = @transform_4, window_bounds = array<i64: 3, 128, 128>}, {pipeline_mode = #tpu.pipeline_mode<synchronous>, transform_indices = @transform_5, window_bounds = array<i64: 1, 128>}, {pipeline_mode = #tpu.pipeline_mode<synchronous>, transform_indices = @transform_6, window_bounds = array<i64: 1, 128>}, {transform_indices = @transform_7, window_bounds = array<i64: 128, 128>}]} {
    %c0 = arith.constant 0 : index
    %c0_0 = arith.constant 0 : index
    %0 = vector.load %arg1[%c0, %c0_0] : memref<128x128xf32, #tpu.memory_space<vmem>>, vector<128x128xf32>
    %1 = tpu.iota {dimensions = array<i32: 0>} : vector<128x128xi32>
    %c16_i32 = arith.constant 16 : i32
    %c0_i32 = arith.constant 0 : i32
    %2 = arith.cmpi eq, %c16_i32, %c0_i32 : i32
    %c1_i32 = arith.constant 1 : i32
    %3 = arith.select %2, %c1_i32, %c16_i32 : i32
    %4 = vector.broadcast %3 : i32 to vector<128x128xi32>
    %5 = arith.remsi %1, %4 : vector<128x128xi32>
    %c0_i32_1 = arith.constant 0 : i32
    %6 = vector.broadcast %c0_i32_1 : i32 to vector<128x128xi32>
    %7 = arith.cmpi ne, %5, %6 : vector<128x128xi32>
    %c0_i32_2 = arith.constant 0 : i32
    %8 = vector.broadcast %c0_i32_2 : i32 to vector<128x128xi32>
    %9 = arith.cmpi slt, %5, %8 : vector<128x128xi32>
    %c0_i32_3 = arith.constant 0 : i32
    %10 = arith.cmpi slt, %3, %c0_i32_3 : i32
    %11 = vector.broadcast %10 : i1 to vector<128x128xi1>
    %12 = vector.broadcast %11 : vector<128x128xi1> to vector<128x128xi1>
    %13 = arith.xori %9, %12 : vector<128x128xi1>
    %14 = arith.andi %13, %7 : vector<128x128xi1>
    %15 = vector.broadcast %3 : i32 to vector<128x128xi32>
    %16 = arith.addi %5, %15 : vector<128x128xi32>
    %17 = arith.select %14, %16, %5 : vector<128x128xi1>, vector<128x128xi32>
    %c0_i32_4 = arith.constant 0 : i32
    %18 = vector.broadcast %c0_i32_4 : i32 to vector<128x128xi32>
    %19 = arith.cmpi ne, %17, %18 : vector<128x128xi32>
    %c16_i32_5 = arith.constant 16 : i32
    %c0_i32_6 = arith.constant 0 : i32
    %20 = arith.cmpi eq, %c16_i32_5, %c0_i32_6 : i32
    %c1_i32_7 = arith.constant 1 : i32
    %21 = arith.select %20, %c1_i32_7, %c16_i32_5 : i32
    %22 = vector.broadcast %21 : i32 to vector<128x128xi32>
    %23 = arith.remsi %1, %22 : vector<128x128xi32>
    %c0_i32_8 = arith.constant 0 : i32
    %24 = vector.broadcast %c0_i32_8 : i32 to vector<128x128xi32>
    %25 = arith.cmpi ne, %23, %24 : vector<128x128xi32>
    %c0_i32_9 = arith.constant 0 : i32
    %26 = vector.broadcast %c0_i32_9 : i32 to vector<128x128xi32>
    %27 = arith.cmpi slt, %23, %26 : vector<128x128xi32>
    %c0_i32_10 = arith.constant 0 : i32
    %28 = arith.cmpi slt, %21, %c0_i32_10 : i32
    %29 = vector.broadcast %28 : i1 to vector<128x128xi1>
    %30 = vector.broadcast %29 : vector<128x128xi1> to vector<128x128xi1>
    %31 = arith.xori %27, %30 : vector<128x128xi1>
    %32 = arith.andi %31, %25 : vector<128x128xi1>
    %33 = vector.broadcast %21 : i32 to vector<128x128xi32>
    %34 = arith.addi %23, %33 : vector<128x128xi32>
    %35 = arith.select %32, %34, %23 : vector<128x128xi1>, vector<128x128xi32>
    %c15_i32 = arith.constant 15 : i32
    %36 = vector.broadcast %c15_i32 : i32 to vector<128x128xi32>
    %37 = arith.cmpi ne, %35, %36 : vector<128x128xi32>
    %c1_i32_11 = arith.constant 1 : i32
    %38 = tpu.dynamic_rotate %0 by %c1_i32_11 dim 0 : vector<128x128xf32>, i32 -> vector<128x128xf32>
    %cst = arith.constant 0.000000e+00 : f32
    %39 = vector.broadcast %cst : f32 to vector<128x128xf32>
    %40 = arith.select %19, %38, %39 : vector<128x128xi1>, vector<128x128xf32>
    %c127_i32 = arith.constant 127 : i32
    %41 = tpu.dynamic_rotate %0 by %c127_i32 dim 0 : vector<128x128xf32>, i32 -> vector<128x128xf32>
    %cst_12 = arith.constant 0.000000e+00 : f32
    %42 = vector.broadcast %cst_12 : f32 to vector<128x128xf32>
    %43 = arith.select %37, %41, %42 : vector<128x128xi1>, vector<128x128xf32>
    %44 = arith.truncf %40 : vector<128x128xf32> to vector<128x128xbf16>
    %c0_13 = arith.constant 0 : index
    %c0_14 = arith.constant 0 : index
    %c0_15 = arith.constant 0 : index
    %45 = vector.load %arg2[%c0_13, %c0_14, %c0_15] : memref<3x128x128xbf16, #tpu.memory_space<vmem>>, vector<1x128x128xbf16>
    %46 = vector.shape_cast %45 : vector<1x128x128xbf16> to vector<128x128xbf16>
    %cst_16 = arith.constant dense<0.000000e+00> : vector<128x128xf32>
    %47 = tpu.matmul %44, %46, %cst_16 {dimension_numbers = #tpu.dot_dimension_numbers<[1], [0], [0], [1], [0, 0, 1, 1], [], []>} : vector<128x128xbf16>, vector<128x128xbf16>, vector<128x128xf32> -> vector<128x128xf32>
    %48 = arith.truncf %0 : vector<128x128xf32> to vector<128x128xbf16>
    %c1 = arith.constant 1 : index
    %c0_17 = arith.constant 0 : index
    %c0_18 = arith.constant 0 : index
    %49 = vector.load %arg2[%c1, %c0_17, %c0_18] : memref<3x128x128xbf16, #tpu.memory_space<vmem>>, vector<1x128x128xbf16>
    %50 = vector.shape_cast %49 : vector<1x128x128xbf16> to vector<128x128xbf16>
    %cst_19 = arith.constant dense<0.000000e+00> : vector<128x128xf32>
    %51 = tpu.matmul %48, %50, %cst_19 {dimension_numbers = #tpu.dot_dimension_numbers<[1], [0], [0], [1], [0, 0, 1, 1], [], []>} : vector<128x128xbf16>, vector<128x128xbf16>, vector<128x128xf32> -> vector<128x128xf32>
    %52 = arith.addf %47, %51 : vector<128x128xf32>
    %53 = arith.truncf %43 : vector<128x128xf32> to vector<128x128xbf16>
    %c2 = arith.constant 2 : index
    %c0_20 = arith.constant 0 : index
    %c0_21 = arith.constant 0 : index
    %54 = vector.load %arg2[%c2, %c0_20, %c0_21] : memref<3x128x128xbf16, #tpu.memory_space<vmem>>, vector<1x128x128xbf16>
    %55 = vector.shape_cast %54 : vector<1x128x128xbf16> to vector<128x128xbf16>
    %cst_22 = arith.constant dense<0.000000e+00> : vector<128x128xf32>
    %56 = tpu.matmul %53, %55, %cst_22 {dimension_numbers = #tpu.dot_dimension_numbers<[1], [0], [0], [1], [0, 0, 1, 1], [], []>} : vector<128x128xbf16>, vector<128x128xbf16>, vector<128x128xf32> -> vector<128x128xf32>
    %57 = arith.addf %52, %56 : vector<128x128xf32>
    %c0_23 = arith.constant 0 : index
    %c0_24 = arith.constant 0 : index
    %58 = vector.load %arg3[%c0_23, %c0_24] : memref<1x128xf32, #tpu.memory_space<vmem>>, vector<1x128xf32>
    %59 = vector.broadcast %58 : vector<1x128xf32> to vector<128x128xf32>
    %60 = arith.mulf %57, %59 : vector<128x128xf32>
    %c0_25 = arith.constant 0 : index
    %c0_26 = arith.constant 0 : index
    %61 = vector.load %arg4[%c0_25, %c0_26] : memref<1x128xf32, #tpu.memory_space<vmem>>, vector<1x128xf32>
    %62 = vector.broadcast %61 : vector<1x128xf32> to vector<128x128xf32>
    %63 = arith.addf %60, %62 : vector<128x128xf32>
    %cst_27 = arith.constant 0.000000e+00 : f32
    %64 = vector.broadcast %cst_27 : f32 to vector<128x128xf32>
    %65 = arith.maximumf %63, %64 : vector<128x128xf32>
    %c1_i32_28 = arith.constant 1 : i32
    %66 = tpu.dynamic_rotate %65 by %c1_i32_28 dim 0 : vector<128x128xf32>, i32 -> vector<128x128xf32>
    %cst_29 = arith.constant 0.000000e+00 : f32
    %67 = vector.broadcast %cst_29 : f32 to vector<128x128xf32>
    %68 = arith.select %19, %66, %67 : vector<128x128xi1>, vector<128x128xf32>
    %c127_i32_30 = arith.constant 127 : i32
    %69 = tpu.dynamic_rotate %65 by %c127_i32_30 dim 0 : vector<128x128xf32>, i32 -> vector<128x128xf32>
    %cst_31 = arith.constant 0.000000e+00 : f32
    %70 = vector.broadcast %cst_31 : f32 to vector<128x128xf32>
    %71 = arith.select %37, %69, %70 : vector<128x128xi1>, vector<128x128xf32>
    %72 = arith.truncf %68 : vector<128x128xf32> to vector<128x128xbf16>
    %c0_32 = arith.constant 0 : index
    %c0_33 = arith.constant 0 : index
    %c0_34 = arith.constant 0 : index
    %73 = vector.load %arg5[%c0_32, %c0_33, %c0_34] : memref<3x128x128xbf16, #tpu.memory_space<vmem>>, vector<1x128x128xbf16>
    %74 = vector.shape_cast %73 : vector<1x128x128xbf16> to vector<128x128xbf16>
    %cst_35 = arith.constant dense<0.000000e+00> : vector<128x128xf32>
    %75 = tpu.matmul %72, %74, %cst_35 {dimension_numbers = #tpu.dot_dimension_numbers<[1], [0], [0], [1], [0, 0, 1, 1], [], []>} : vector<128x128xbf16>, vector<128x128xbf16>, vector<128x128xf32> -> vector<128x128xf32>
    %76 = arith.truncf %65 : vector<128x128xf32> to vector<128x128xbf16>
    %c1_36 = arith.constant 1 : index
    %c0_37 = arith.constant 0 : index
    %c0_38 = arith.constant 0 : index
    %77 = vector.load %arg5[%c1_36, %c0_37, %c0_38] : memref<3x128x128xbf16, #tpu.memory_space<vmem>>, vector<1x128x128xbf16>
    %78 = vector.shape_cast %77 : vector<1x128x128xbf16> to vector<128x128xbf16>
    %cst_39 = arith.constant dense<0.000000e+00> : vector<128x128xf32>
    %79 = tpu.matmul %76, %78, %cst_39 {dimension_numbers = #tpu.dot_dimension_numbers<[1], [0], [0], [1], [0, 0, 1, 1], [], []>} : vector<128x128xbf16>, vector<128x128xbf16>, vector<128x128xf32> -> vector<128x128xf32>
    %80 = arith.addf %75, %79 : vector<128x128xf32>
    %81 = arith.truncf %71 : vector<128x128xf32> to vector<128x128xbf16>
    %c2_40 = arith.constant 2 : index
    %c0_41 = arith.constant 0 : index
    %c0_42 = arith.constant 0 : index
    %82 = vector.load %arg5[%c2_40, %c0_41, %c0_42] : memref<3x128x128xbf16, #tpu.memory_space<vmem>>, vector<1x128x128xbf16>
    %83 = vector.shape_cast %82 : vector<1x128x128xbf16> to vector<128x128xbf16>
    %cst_43 = arith.constant dense<0.000000e+00> : vector<128x128xf32>
    %84 = tpu.matmul %81, %83, %cst_43 {dimension_numbers = #tpu.dot_dimension_numbers<[1], [0], [0], [1], [0, 0, 1, 1], [], []>} : vector<128x128xbf16>, vector<128x128xbf16>, vector<128x128xf32> -> vector<128x128xf32>
    %85 = arith.addf %80, %84 : vector<128x128xf32>
    %c0_44 = arith.constant 0 : index
    %c0_45 = arith.constant 0 : index
    %86 = vector.load %arg6[%c0_44, %c0_45] : memref<1x128xf32, #tpu.memory_space<vmem>>, vector<1x128xf32>
    %87 = vector.broadcast %86 : vector<1x128xf32> to vector<128x128xf32>
    %88 = arith.mulf %85, %87 : vector<128x128xf32>
    %c0_46 = arith.constant 0 : index
    %c0_47 = arith.constant 0 : index
    %89 = vector.load %arg7[%c0_46, %c0_47] : memref<1x128xf32, #tpu.memory_space<vmem>>, vector<1x128xf32>
    %90 = vector.broadcast %89 : vector<1x128xf32> to vector<128x128xf32>
    %91 = arith.addf %88, %90 : vector<128x128xf32>
    %92 = arith.addf %91, %0 : vector<128x128xf32>
    %cst_48 = arith.constant 0.000000e+00 : f32
    %93 = vector.broadcast %cst_48 : f32 to vector<128x128xf32>
    %94 = arith.maximumf %92, %93 : vector<128x128xf32>
    %c0_49 = arith.constant 0 : index
    %c0_50 = arith.constant 0 : index
    %95 = vector.load %arg8[%c0_49, %c0_50] : memref<128x128xf32, #tpu.memory_space<vmem>>, vector<128x128xf32>
    tpu.vector_store %arg8[%c0_49, %c0_50], %94 {strides = array<i32>} : memref<128x128xf32, #tpu.memory_space<vmem>>, vector<128x128xf32>,
    return
  }
  func.func @transform_0(%arg0: i32) -> (i32, i32) {
    %c0_i32 = arith.constant 0 : i32
    %c0_i32_0 = arith.constant 0 : i32
    return %arg0, %c0_i32 : i32, i32
  }
  func.func @transform_1(%arg0: i32) -> (i32, i32, i32) {
    %c0_i32 = arith.constant 0 : i32
    %c0_i32_0 = arith.constant 0 : i32
    %c0_i32_1 = arith.constant 0 : i32
    %c0_i32_2 = arith.constant 0 : i32
    return %c0_i32, %c0_i32_0, %c0_i32_1 : i32, i32, i32
  }
  func.func @transform_2(%arg0: i32) -> (i32, i32) {
    %c0_i32 = arith.constant 0 : i32
    %c0_i32_0 = arith.constant 0 : i32
    %c0_i32_1 = arith.constant 0 : i32
    return %c0_i32, %c0_i32_0 : i32, i32
  }
  func.func @transform_3(%arg0: i32) -> (i32, i32) {
    %c0_i32 = arith.constant 0 : i32
    %c0_i32_0 = arith.constant 0 : i32
    %c0_i32_1 = arith.constant 0 : i32
    return %c0_i32, %c0_i32_0 : i32, i32
  }
  func.func @transform_4(%arg0: i32) -> (i32, i32, i32) {
    %c0_i32 = arith.constant 0 : i32
    %c0_i32_0 = arith.constant 0 : i32
    %c0_i32_1 = arith.constant 0 : i32
    %c0_i32_2 = arith.constant 0 : i32
    return %c0_i32, %c0_i32_0, %c0_i32_1 : i32, i32, i32
  }
  func.func @transform_5(%arg0: i32) -> (i32, i32) {
    %c0_i32 = arith.constant 0 : i32
    %c0_i32_0 = arith.constant 0 : i32
    %c0_i32_1 = arith.constant 0 : i32
    return %c0_i32, %c0_i32_0 : i32, i32
  }
  func.func @transform_6(%arg0: i32) -> (i32, i32) {
    %c0_i32 = arith.constant 0 : i32
    %c0_i32_0 = arith.constant 0 : i32
    %c0_i32_1 = arith.constant 0 : i32
    return %c0_i32, %c0_i32_0 : i32, i32
  }
  func.func @transform_7(%arg0: i32) -> (i32, i32) {
    %c0_i32 = arith.constant 0 : i32
    %c0_i32_0 = arith.constant 0 : i32
    return %arg0, %c0_i32 : i32, i32
  }
}

</mosaic_0001>

<llo_original>
// kernel: tpu_custom_call.1
$region0: #{tpu_custom_call.1}
  #allocation0 [shape = 'u32[]', space=smem, size = 0x4, offset = 0x4, fixed_abs, tag = 'smem constant byte address 0x4 - core index']
  #allocation1 [shape = 'u32[144,128]{1,0:T(1,128)}', space=vmem, size = 0x12000, scoped, tag = 'internal scratch']
  %s0 = inlined_call_operand.hbm [shape: f32[256,128], index: 0, kind: input, shape index: {}]
  %s1 = inlined_call_operand.hbm [shape: bf16[3,128,128], index: 1, kind: input, shape index: {}]
  %s2 = inlined_call_operand.vmem [shape: f32[1,128], index: 2, kind: input, shape index: {}]
  %s3 = inlined_call_operand.vmem [shape: f32[1,128], index: 3, kind: input, shape index: {}]
  %s4 = inlined_call_operand.hbm [shape: bf16[3,128,128], index: 4, kind: input, shape index: {}]
  %s5 = inlined_call_operand.vmem [shape: f32[1,128], index: 5, kind: input, shape index: {}]
  %s6 = inlined_call_operand.vmem [shape: f32[1,128], index: 6, kind: input, shape index: {}]
  %s7 = inlined_call_operand.hbm [shape: f32[256,128], index: 7, kind: output, shape index: {}]
  %s8 = sld [smem:[#allocation0]]
  $region73: #{tpu_custom_call.1} parent=0
    _
  %s10 = ssub.s32 1, %s8
  %s11 = scalar_select 0, %s10, %s8
  $region1: #{tpu_custom_call.1} parent=0
    #allocation2 [shape = 'u8[131072]{0}', space=vmem, size = 0x20000, scoped, tag = 'input window, operand 0']
    #allocation3 [shape = 's32[2]{0}', space=sflag, size = 0x8, scoped, tag = 'scoped memory for tpu_custom_call.1']
    #allocation4 [shape = 's32[2]{0}', space=sflag, size = 0x8, scoped, tag = 'scoped memory for tpu_custom_call.1']
    #allocation5 [shape = 'u8[98304]{0}', space=vmem, size = 0x18000, scoped, tag = 'input window, operand 1, single buffered']
    #allocation6 [shape = 's32[1]{0}', space=sflag, size = 0x4, scoped, tag = 'scoped memory for tpu_custom_call.1']
    #allocation7 [shape = 'u8[98304]{0}', space=vmem, size = 0x18000, scoped, tag = 'input window, operand 4, single buffered']
    #allocation8 [shape = 'u8[131072]{0}', space=vmem, size = 0x20000, scoped, tag = 'output window, operand 0']
    %12 = vsyncpa [#allocation3], 0
    %s13 = scalar_lea.sflag [#allocation3], 1
    %14 = vsyncpa %s13, 0
    %15 = vsyncpa [#allocation6], 0
    %16 = vsyncpa [#allocation4], 0
    %s17 = scalar_lea.sflag [#allocation4], 1
    %18 = vsyncpa %s17, 0
    loop: start=0, step=1, limit=4
    $region2: #{tpu_custom_call.1} parent=1 // loop_pre_header
      _
    $region3: #{tpu_custom_call.1} parent=1 // loop_header
      %s20 = sphi 0, %s24
      %p21 = scmp.ge.s32.totalorder %s20, 4
      %s30 = sphi 0, %s32
      %s33 = sphi 0, %s30
      %s34 = sphi 0, %s33
      %s50 = sphi 0, %s34
      %s54 = sphi 0, %s54
      %s56 = sphi 0, %s54
      %s57 = sphi 0, %s56
      %s71 = sphi 0, %s57
      %s75 = sphi 0, %s75
      %s77 = sphi 0, %s75
      %s78 = sphi 0, %s77
      %s92 = sphi 0, %s78
      %s96 = sphi 0, %s96
      %s98 = sphi 0, %s96
      %s99 = sphi 0, %s98
      %s113 = sphi 0, %s99
      %s117 = sphi 0, %s117
      %s119 = sphi 0, %s117
      %s120 = sphi 0, %s119
      %s134 = sphi 0, %s120
      %s138 = sphi 0, %s138
      %s140 = sphi 0, %s138
      %s141 = sphi 0, %s140
      %s155 = sphi 0, %s141
      %s159 = sphi 0, %s159
      %s161 = sphi 0, %s159
      %s162 = sphi 0, %s161
      %s176 = sphi 0, %s162
      %s182 = sphi 0, %s184
      %s185 = sphi 0, %s182
      %s186 = sphi 0, %s185
      %s202 = sphi 0, %s186
    $region4: #{tpu_custom_call.1} parent=1 // loop_header_branch
      %23 = sbr.rel (%p21) target = $region8
    $region5: #{tpu_custom_call.1} parent=1 // loop_body
      %s25 = ssub.s32 %s20, 1
      %s26 = ssub.s32 %s20, 2
      %s27 = sadd.s32 %s20, 1
      %s28 = ssub.s32 %s20, %s27
      %p29 = scmp.eq.s32.totalorder %s28, 0
      %s31 = sadd.s32 %s30, 1
      %s32 = scalar_select %p29, %s30, %s31
      %p35 = pneg %p29
      %p36 = scmp.eq.s32.totalorder %s20, 1
      %p37 = por %p35, %p36
      %p38 = scmp.ne.s32.totalorder %s30, %s33
      %p39 = scmp.eq.s32.totalorder %s20, 0
      %p40 = por %p38, %p39
      %p41 = scmp.ne.s32.totalorder %s30, %s33
      %p42 = scmp.eq.s32.totalorder %s25, 1
      %p43 = por %p41, %p42
      %p44 = scmp.ne.s32.totalorder %s33, %s34
      %p45 = scmp.eq.s32.totalorder %s25, 0
      %p46 = por %p44, %p45
      %p47 = scmp.ne.s32.totalorder %s33, %s34
      %p48 = scmp.eq.s32.totalorder %s26, 1
      %p49 = por %p47, %p48
      %p51 = scmp.ne.s32.totalorder %s34, %s50
      %p52 = scmp.eq.s32.totalorder %s26, 0
      %p53 = por %p51, %p52
      %s55 = sadd.s32 %s54, 1
      %p58 = scmp.eq.s32.totalorder %s20, 1
      %p59 = scmp.ne.s32.totalorder %s54, %s56
      %p60 = scmp.eq.s32.totalorder %s20, 0
      %p61 = por %p59, %p60
      %p62 = scmp.ne.s32.totalorder %s54, %s56
      %p63 = scmp.eq.s32.totalorder %s25, 1
      %p64 = por %p62, %p63
      %p65 = scmp.ne.s32.totalorder %s56, %s57
      %p66 = scmp.eq.s32.totalorder %s25, 0
      %p67 = por %p65, %p66
      %p68 = scmp.ne.s32.totalorder %s56, %s57
      %p69 = scmp.eq.s32.totalorder %s26, 1
      %p70 = por %p68, %p69
      %p72 = scmp.ne.s32.totalorder %s57, %s71
      %p73 = scmp.eq.s32.totalorder %s26, 0
      %p74 = por %p72, %p73
      %s76 = sadd.s32 %s75, 1
      %p79 = scmp.eq.s32.totalorder %s20, 1
      %p80 = scmp.ne.s32.totalorder %s75, %s77
      %p81 = scmp.eq.s32.totalorder %s20, 0
      %p82 = por %p80, %p81
      %p83 = scmp.ne.s32.totalorder %s75, %s77
      %p84 = scmp.eq.s32.totalorder %s25, 1
      %p85 = por %p83, %p84
      %p86 = scmp.ne.s32.totalorder %s77, %s78
      %p87 = scmp.eq.s32.totalorder %s25, 0
      %p88 = por %p86, %p87
      %p89 = scmp.ne.s32.totalorder %s77, %s78
      %p90 = scmp.eq.s32.totalorder %s26, 1
      %p91 = por %p89, %p90
      %p93 = scmp.ne.s32.totalorder %s78, %s92
      %p94 = scmp.eq.s32.totalorder %s26, 0
      %p95 = por %p93, %p94
      %s97 = sadd.s32 %s96, 1
      %p100 = scmp.eq.s32.totalorder %s20, 1
      %p101 = scmp.ne.s32.totalorder %s96, %s98
      %p102 = scmp.eq.s32.totalorder %s20, 0
      %p103 = por %p101, %p102
      %p104 = scmp.ne.s32.totalorder %s96, %s98
      %p105 = scmp.eq.s32.totalorder %s25, 1
      %p106 = por %p104, %p105
      %p107 = scmp.ne.s32.totalorder %s98, %s99
      %p108 = scmp.eq.s32.totalorder %s25, 0
      %p109 = por %p107, %p108
      %p110 = scmp.ne.s32.totalorder %s98, %s99
      %p111 = scmp.eq.s32.totalorder %s26, 1
      %p112 = por %p110, %p111
      %p114 = scmp.ne.s32.totalorder %s99, %s113
      %p115 = scmp.eq.s32.totalorder %s26, 0
      %p116 = por %p114, %p115
      %s118 = sadd.s32 %s117, 1
      %p121 = scmp.eq.s32.totalorder %s20, 1
      %p122 = scmp.ne.s32.totalorder %s117, %s119
      %p123 = scmp.eq.s32.totalorder %s20, 0
      %p124 = por %p122, %p123
      %p125 = scmp.ne.s32.totalorder %s117, %s119
      %p126 = scmp.eq.s32.totalorder %s25, 1
      %p127 = por %p125, %p126
      %p128 = scmp.ne.s32.totalorder %s119, %s120
      %p129 = scmp.eq.s32.totalorder %s25, 0
      %p130 = por %p128, %p129
      %p131 = scmp.ne.s32.totalorder %s119, %s120
      %p132 = scmp.eq.s32.totalorder %s26, 1
      %p133 = por %p131, %p132
      %p135 = scmp.ne.s32.totalorder %s120, %s134
      %p136 = scmp.eq.s32.totalorder %s26, 0
      %p137 = por %p135, %p136
      %s139 = sadd.s32 %s138, 1
      %p142 = scmp.eq.s32.totalorder %s20, 1
      %p143 = scmp.ne.s32.totalorder %s138, %s140
      %p144 = scmp.eq.s32.totalorder %s20, 0
      %p145 = por %p143, %p144
      %p146 = scmp.ne.s32.totalorder %s138, %s140
      %p147 = scmp.eq.s32.totalorder %s25, 1
      %p148 = por %p146, %p147
      %p149 = scmp.ne.s32.totalorder %s140, %s141
      %p150 = scmp.eq.s32.totalorder %s25, 0
      %p151 = por %p149, %p150
      %p152 = scmp.ne.s32.totalorder %s140, %s141
      %p153 = scmp.eq.s32.totalorder %s26, 1
      %p154 = por %p152, %p153
      %p156 = scmp.ne.s32.totalorder %s141, %s155
      %p157 = scmp.eq.s32.totalorder %s26, 0
      %p158 = por %p156, %p157
      %s160 = sadd.s32 %s159, 1
      %p163 = scmp.eq.s32.totalorder %s20, 1
      %p164 = scmp.ne.s32.totalorder %s159, %s161
      %p165 = scmp.eq.s32.totalorder %s20, 0
      %p166 = por %p164, %p165
      %p167 = scmp.ne.s32.totalorder %s159, %s161
      %p168 = scmp.eq.s32.totalorder %s25, 1
      %p169 = por %p167, %p168
      %p170 = scmp.ne.s32.totalorder %s161, %s162
      %p171 = scmp.eq.s32.totalorder %s25, 0
      %p172 = por %p170, %p171
      %p173 = scmp.ne.s32.totalorder %s161, %s162
      %p174 = scmp.eq.s32.totalorder %s26, 1
      %p175 = por %p173, %p174
      %p177 = scmp.ne.s32.totalorder %s162, %s176
      %p178 = scmp.eq.s32.totalorder %s26, 0
      %p179 = por %p177, %p178
      %s180 = ssub.s32 %s20, %s27
      %p181 = scmp.eq.s32.totalorder %s180, 0
      %s183 = sadd.s32 %s182, 1
      %s184 = scalar_select %p181, %s182, %s183
      %p187 = pneg %p181
      %p188 = scmp.eq.s32.totalorder %s20, 1
      %p189 = por %p187, %p188
      %p190 = scmp.ne.s32.totalorder %s182, %s185
      %p191 = scmp.eq.s32.totalorder %s20, 0
      %p192 = por %p190, %p191
      %p193 = scmp.ne.s32.totalorder %s182, %s185
      %p194 = scmp.eq.s32.totalorder %s25, 1
      %p195 = por %p193, %p194
      %p196 = scmp.ne.s32.totalorder %s185, %s186
      %p197 = scmp.eq.s32.totalorder %s25, 0
      %p198 = por %p196, %p197
      %p199 = scmp.ne.s32.totalorder %s185, %s186
      %p200 = scmp.eq.s32.totalorder %s26, 1
      %p201 = por %p199, %p200
      %p203 = scmp.ne.s32.totalorder %s186, %s202
      %p204 = scmp.eq.s32.totalorder %s26, 0
      %p205 = por %p203, %p204
      %p206 = scmp.le.s32.totalorder 1, %s20
      %p207 = scmp.lt.s32.totalorder %s20, 3
      %p208 = pnand %p206, %p207
      %p209 = pneg %p208
      // Predicated region
      $region9: #{tpu_custom_call.1} parent=5 // pred_check
        _
      $region10: #{tpu_custom_call.1} parent=5 // pred_check_branch
        %211 = sbr.rel (%p208) target = $region12
      $region11: #{tpu_custom_call.1} parent=5 // pred_region
        %s212 = ssub.s32 %s20, 1
        // Predicated region
        $region13: #{tpu_custom_call.1} parent=11 // pred_check
          %p213 = pneg %p67
        $region14: #{tpu_custom_call.1} parent=11 // pred_check_branch
          %215 = sbr.rel (%p213) target = $region16
        $region15: #{tpu_custom_call.1} parent=11 // pred_region
          %s217 = ssub.s32 3072, 3072
          %218 = vsyncadd [#allocation6], %s217
          %s219 = sshll.u32 [#allocation5], 4
          %s220 = int_to_ptr.vmem [resolvable:$true] %s219
          %225 = dma.hbm_to_vmem [thread:$0]  %s1, 3072, %s220, [#allocation6], 64, 64, 4
        $region16: #{tpu_custom_call.1} parent=11 // pred_fallthru
          _
        // Predicated region
        $region17: #{tpu_custom_call.1} parent=11 // pred_check
          %p226 = pneg %p88
        $region18: #{tpu_custom_call.1} parent=11 // pred_check_branch
          %228 = sbr.rel (%p226) target = $region20
        $region19: #{tpu_custom_call.1} parent=11 // pred_region
          _
        $region20: #{tpu_custom_call.1} parent=11 // pred_fallthru
          _
        // Predicated region
        $region21: #{tpu_custom_call.1} parent=11 // pred_check
          %p229 = pneg %p109
        $region22: #{tpu_custom_call.1} parent=11 // pred_check_branch
          %231 = sbr.rel (%p229) target = $region24
        $region23: #{tpu_custom_call.1} parent=11 // pred_region
          _
        $region24: #{tpu_custom_call.1} parent=11 // pred_fallthru
          _
        // Predicated region
        $region25: #{tpu_custom_call.1} parent=11 // pred_check
          %p232 = pneg %p130
        $region26: #{tpu_custom_call.1} parent=11 // pred_check_branch
          %234 = sbr.rel (%p232) target = $region28
        $region27: #{tpu_custom_call.1} parent=11 // pred_region
          %s236 = ssub.s32 3072, 3072
          %237 = vsyncadd [#allocation6], %s236
          %s238 = sshll.u32 [#allocation7], 4
          %s239 = int_to_ptr.vmem [resolvable:$true] %s238
          %244 = dma.hbm_to_vmem [thread:$0]  %s4, 3072, %s239, [#allocation6], 64, 64, 4
        $region28: #{tpu_custom_call.1} parent=11 // pred_fallthru
          _
        // Predicated region
        $region29: #{tpu_custom_call.1} parent=11 // pred_check
          %p245 = pneg %p151
        $region30: #{tpu_custom_call.1} parent=11 // pred_check_branch
          %247 = sbr.rel (%p245) target = $region32
        $region31: #{tpu_custom_call.1} parent=11 // pred_region
          _
        $region32: #{tpu_custom_call.1} parent=11 // pred_fallthru
          _
        // Predicated region
        $region33: #{tpu_custom_call.1} parent=11 // pred_check
          %p248 = pneg %p172
        $region34: #{tpu_custom_call.1} parent=11 // pred_check_branch
          %250 = sbr.rel (%p248) target = $region36
        $region35: #{tpu_custom_call.1} parent=11 // pred_region
          _
        $region36: #{tpu_custom_call.1} parent=11 // pred_fallthru
          _
      $region12: #{tpu_custom_call.1} parent=5 // pred_fallthru
        _
      %p251 = scmp.lt.s32.totalorder %s20, 2
      // Predicated region
      $region37: #{tpu_custom_call.1} parent=5 // pred_check
        %p252 = pneg %p251
      $region38: #{tpu_custom_call.1} parent=5 // pred_check_branch
        %254 = sbr.rel (%p252) target = $region40
      $region39: #{tpu_custom_call.1} parent=5 // pred_region
        // Predicated region
        $region41: #{tpu_custom_call.1} parent=39 // pred_check
          %p255 = pneg %p40
        $region42: #{tpu_custom_call.1} parent=39 // pred_check_branch
          %257 = sbr.rel (%p255) target = $region44
        $region43: #{tpu_custom_call.1} parent=39 // pred_region
          %s258 = sand.u32 %s30, 1
          %s259 = scalar_lea.sflag [#allocation3], %s258
          %s260 = sand.u32 %s30, 1
          %s261 = smul.addr %s260, 128
          %s262 = scalar_lea.vmem [#allocation2], %s261
          %s263 = smul.u32 16, %s20
          %s265 = ssub.s32 2048, 2048
          %266 = vsyncadd %s259, %s265
          %s267 = smul.addr %s263, 128
          %s268 = scalar_lea.hbm %s0, %s267
          %s269 = sshll.u32 %s262, 4
          %s270 = int_to_ptr.vmem [resolvable:$true] %s269
          %275 = dma.hbm_to_vmem [thread:$0]  %s268, 2048, %s270, %s259, 128, 128, 8
        $region44: #{tpu_custom_call.1} parent=39 // pred_fallthru
          _
      $region40: #{tpu_custom_call.1} parent=5 // pred_fallthru
        _
      %p276 = scmp.le.s32.totalorder 1, %s20
      %p277 = scmp.lt.s32.totalorder %s20, 3
      %p278 = pnand %p276, %p277
      %p279 = pneg %p278
      // Predicated region
      $region45: #{tpu_custom_call.1} parent=5 // pred_check
        _
      $region46: #{tpu_custom_call.1} parent=5 // pred_check_branch
        %281 = sbr.rel (%p278) target = $region48
      $region47: #{tpu_custom_call.1} parent=5 // pred_region
        %s282 = ssub.s32 %s20, 1
        %s283 = sand.u32 %s33, 1
        %s284 = scalar_lea.sflag [#allocation3], %s283
        %s285 = sand.u32 %s33, 1
        %s286 = smul.addr %s285, 128
        %s287 = scalar_lea.vmem [#allocation2], %s286
        // Predicated region
        $region49: #{tpu_custom_call.1} parent=47 // pred_check
          %p288 = pneg %p46
        $region50: #{tpu_custom_call.1} parent=47 // pred_check_branch
          %290 = sbr.rel (%p288) target = $region52
        $region51: #{tpu_custom_call.1} parent=47 // pred_region
          %291 = dma.done %s284, 2048
        $region52: #{tpu_custom_call.1} parent=47 // pred_fallthru
          _
        // Predicated region
        $region53: #{tpu_custom_call.1} parent=47 // pred_check
          %p292 = pneg %p67
        $region54: #{tpu_custom_call.1} parent=47 // pred_check_branch
          %294 = sbr.rel (%p292) target = $region56
        $region55: #{tpu_custom_call.1} parent=47 // pred_region
          %295 = dma.done [#allocation6], 3072
        $region56: #{tpu_custom_call.1} parent=47 // pred_fallthru
          _
        // Predicated region
        $region57: #{tpu_custom_call.1} parent=47 // pred_check
          %p296 = pneg %p130
        $region58: #{tpu_custom_call.1} parent=47 // pred_check_branch
          %298 = sbr.rel (%p296) target = $region60
        $region59: #{tpu_custom_call.1} parent=47 // pred_region
          %299 = dma.done [#allocation6], 3072
        $region60: #{tpu_custom_call.1} parent=47 // pred_fallthru
          _
        %s300 = sand.u32 %s33, 1
        %s301 = scalar_lea.sflag [#allocation3], %s300
        %s302 = sand.u32 %s33, 1
        %s303 = smul.addr %s302, 128
        %s304 = scalar_lea.vmem [#allocation2], %s303
        %p305 = pneg %p46
        %p306 = pneg %p43
        %p307 = pneg %p67
        %p308 = pneg %p64
        %p309 = pneg %p88
        %p310 = pneg %p85
        %p311 = pneg %p109
        %p312 = pneg %p106
        %p313 = pneg %p130
        %p314 = pneg %p127
        %p315 = pneg %p151
        %p316 = pneg %p148
        %p317 = pneg %p172
        %p318 = pneg %p169
        %p319 = pneg %p198
        %p320 = pneg %p195
        %s321 = sand.u32 %s185, 1
        %s322 = scalar_lea.sflag [#allocation4], %s321
        %s323 = sand.u32 %s185, 1
        %s324 = smul.addr %s323, 128
        %s325 = scalar_lea.vmem [#allocation8], %s324
        %s326 = smul.u32 16, %s25
        %s327 = smul.u32 16, %s25
        %v329 = vld [vmem:[%s287] sm:$0xff]
        %v330 = vld [vmem:[%s287 + $0x8] sm:$0xff]
        %v331 = vld [vmem:[%s287 + $0x10] sm:$0xff]
        %v332 = vld [vmem:[%s287 + $0x18] sm:$0xff]
        %v333 = vld [vmem:[%s287 + $0x20] sm:$0xff]
        %v334 = vld [vmem:[%s287 + $0x28] sm:$0xff]
        %v335 = vld [vmem:[%s287 + $0x30] sm:$0xff]
        %v336 = vld [vmem:[%s287 + $0x38] sm:$0xff]
        %v337 = vld [vmem:[%s287 + $0x40] sm:$0xff]
        %v338 = vld [vmem:[%s287 + $0x48] sm:$0xff]
        %v339 = vld [vmem:[%s287 + $0x50] sm:$0xff]
        %v340 = vld [vmem:[%s287 + $0x58] sm:$0xff]
        %v341 = vld [vmem:[%s287 + $0x60] sm:$0xff]
        %v342 = vld [vmem:[%s287 + $0x68] sm:$0xff]
        %v343 = vld [vmem:[%s287 + $0x70] sm:$0xff]
        %v344 = vld [vmem:[%s287 + $0x78] sm:$0xff]
        %v345 = vlaneseq
        %v346 = vshrl.u32 %v345, 7
        %v347 = vadd.s32 %v346, 8
        %v348 = vadd.s32 %v346, 16
        %v349 = vadd.s32 %v346, 24
        %v350 = vadd.s32 %v346, 32
        %v351 = vadd.s32 %v346, 40
        %v352 = vadd.s32 %v346, 48
        %v353 = vadd.s32 %v346, 56
        %v354 = vadd.s32 %v346, 64
        %v355 = vadd.s32 %v346, 72
        %v356 = vadd.s32 %v346, 80
        %v357 = vadd.s32 %v346, 88
        %v358 = vadd.s32 %v346, 96
        %v359 = vadd.s32 %v346, 104
        %v360 = vadd.s32 %v346, 112
        %v361 = vadd.s32 %v346, 120
        %vm362 = vcmp.lt.s32.totalorder %v346, 0
        %v363 = vsub.s32 0, %v346
        %v364 = vsel %vm362, %v363, %v346
        %v365 = vshrl.u32 %v364, 4
        %v366 = vand.u32 %v364, 15
        %v367 = vsub.s32 0, %v366
        %v368 = vsel %vm362, %v367, %v366
        %vm369 = vcmp.lt.s32.totalorder %v347, 0
        %v370 = vsub.s32 0, %v347
        %v371 = vsel %vm369, %v370, %v347
        %v372 = vshrl.u32 %v371, 4
        %v373 = vand.u32 %v371, 15
        %v374 = vsub.s32 0, %v373
        %v375 = vsel %vm369, %v374, %v373
        %vm376 = vcmp.lt.s32.totalorder %v348, 0
        %v377 = vsub.s32 0, %v348
        %v378 = vsel %vm376, %v377, %v348
        %v379 = vshrl.u32 %v378, 4
        %v380 = vand.u32 %v378, 15
        %v381 = vsub.s32 0, %v380
        %v382 = vsel %vm376, %v381, %v380
        %vm383 = vcmp.lt.s32.totalorder %v349, 0
        %v384 = vsub.s32 0, %v349
        %v385 = vsel %vm383, %v384, %v349
        %v386 = vshrl.u32 %v385, 4
        %v387 = vand.u32 %v385, 15
        %v388 = vsub.s32 0, %v387
        %v389 = vsel %vm383, %v388, %v387
        %vm390 = vcmp.lt.s32.totalorder %v350, 0
        %v391 = vsub.s32 0, %v350
        %v392 = vsel %vm390, %v391, %v350
        %v393 = vshrl.u32 %v392, 4
        %v394 = vand.u32 %v392, 15
        %v395 = vsub.s32 0, %v394
        %v396 = vsel %vm390, %v395, %v394
        %vm397 = vcmp.lt.s32.totalorder %v351, 0
        %v398 = vsub.s32 0, %v351
        %v399 = vsel %vm397, %v398, %v351
        %v400 = vshrl.u32 %v399, 4
        %v401 = vand.u32 %v399, 15
        %v402 = vsub.s32 0, %v401
        %v403 = vsel %vm397, %v402, %v401
        %vm404 = vcmp.lt.s32.totalorder %v352, 0
        %v405 = vsub.s32 0, %v352
        %v406 = vsel %vm404, %v405, %v352
        %v407 = vshrl.u32 %v406, 4
        %v408 = vand.u32 %v406, 15
        %v409 = vsub.s32 0, %v408
        %v410 = vsel %vm404, %v409, %v408
        %vm411 = vcmp.lt.s32.totalorder %v353, 0
        %v412 = vsub.s32 0, %v353
        %v413 = vsel %vm411, %v412, %v353
        %v414 = vshrl.u32 %v413, 4
        %v415 = vand.u32 %v413, 15
        %v416 = vsub.s32 0, %v415
        %v417 = vsel %vm411, %v416, %v415
        %vm418 = vcmp.lt.s32.totalorder %v354, 0
        %v419 = vsub.s32 0, %v354
        %v420 = vsel %vm418, %v419, %v354
        %v421 = vshrl.u32 %v420, 4
        %v422 = vand.u32 %v420, 15
        %v423 = vsub.s32 0, %v422
        %v424 = vsel %vm418, %v423, %v422
        %vm425 = vcmp.lt.s32.totalorder %v355, 0
        %v426 = vsub.s32 0, %v355
        %v427 = vsel %vm425, %v426, %v355
        %v428 = vshrl.u32 %v427, 4
        %v429 = vand.u32 %v427, 15
        %v430 = vsub.s32 0, %v429
        %v431 = vsel %vm425, %v430, %v429
        %vm432 = vcmp.lt.s32.totalorder %v356, 0
        %v433 = vsub.s32 0, %v356
        %v434 = vsel %vm432, %v433, %v356
        %v435 = vshrl.u32 %v434, 4
        %v436 = vand.u32 %v434, 15
        %v437 = vsub.s32 0, %v436
        %v438 = vsel %vm432, %v437, %v436
        %vm439 = vcmp.lt.s32.totalorder %v357, 0
        %v440 = vsub.s32 0, %v357
        %v441 = vsel %vm439, %v440, %v357
        %v442 = vshrl.u32 %v441, 4
        %v443 = vand.u32 %v441, 15
        %v444 = vsub.s32 0, %v443
        %v445 = vsel %vm439, %v444, %v443
        %vm446 = vcmp.lt.s32.totalorder %v358, 0
        %v447 = vsub.s32 0, %v358
        %v448 = vsel %vm446, %v447, %v358
        %v449 = vshrl.u32 %v448, 4
        %v450 = vand.u32 %v448, 15
        %v451 = vsub.s32 0, %v450
        %v452 = vsel %vm446, %v451, %v450
        %vm453 = vcmp.lt.s32.totalorder %v359, 0
        %v454 = vsub.s32 0, %v359
        %v455 = vsel %vm453, %v454, %v359
        %v456 = vshrl.u32 %v455, 4
        %v457 = vand.u32 %v455, 15
        %v458 = vsub.s32 0, %v457
        %v459 = vsel %vm453, %v458, %v457
        %vm460 = vcmp.lt.s32.totalorder %v360, 0
        %v461 = vsub.s32 0, %v360
        %v462 = vsel %vm460, %v461, %v360
        %v463 = vshrl.u32 %v462, 4
        %v464 = vand.u32 %v462, 15
        %v465 = vsub.s32 0, %v464
        %v466 = vsel %vm460, %v465, %v464
        %vm467 = vcmp.lt.s32.totalorder %v361, 0
        %v468 = vsub.s32 0, %v361
        %v469 = vsel %vm467, %v468, %v361
        %v470 = vshrl.u32 %v469, 4
        %v471 = vand.u32 %v469, 15
        %v472 = vsub.s32 0, %v471
        %v473 = vsel %vm467, %v472, %v471
        %vm474 = vcmp.ne.s32.totalorder %v368, 0
        %vm475 = vcmp.ne.s32.totalorder %v375, 0
        %vm476 = vcmp.ne.s32.totalorder %v382, 0
        %vm477 = vcmp.ne.s32.totalorder %v389, 0
        %vm478 = vcmp.ne.s32.totalorder %v396, 0
        %vm479 = vcmp.ne.s32.totalorder %v403, 0
        %vm480 = vcmp.ne.s32.totalorder %v410, 0
        %vm481 = vcmp.ne.s32.totalorder %v417, 0
        %vm482 = vcmp.ne.s32.totalorder %v424, 0
        %vm483 = vcmp.ne.s32.totalorder %v431, 0
        %vm484 = vcmp.ne.s32.totalorder %v438, 0
        %vm485 = vcmp.ne.s32.totalorder %v445, 0
        %vm486 = vcmp.ne.s32.totalorder %v452, 0
        %vm487 = vcmp.ne.s32.totalorder %v459, 0
        %vm488 = vcmp.ne.s32.totalorder %v466, 0
        %vm489 = vcmp.ne.s32.totalorder %v473, 0
        %vm490 = vcmp.lt.s32.totalorder %v368, 0
        %vm491 = vcmp.lt.s32.totalorder %v375, 0
        %vm492 = vcmp.lt.s32.totalorder %v382, 0
        %vm493 = vcmp.lt.s32.totalorder %v389, 0
        %vm494 = vcmp.lt.s32.totalorder %v396, 0
        %vm495 = vcmp.lt.s32.totalorder %v403, 0
        %vm496 = vcmp.lt.s32.totalorder %v410, 0
        %vm497 = vcmp.lt.s32.totalorder %v417, 0
        %vm498 = vcmp.lt.s32.totalorder %v424, 0
        %vm499 = vcmp.lt.s32.totalorder %v431, 0
        %vm500 = vcmp.lt.s32.totalorder %v438, 0
        %vm501 = vcmp.lt.s32.totalorder %v445, 0
        %vm502 = vcmp.lt.s32.totalorder %v452, 0
        %vm503 = vcmp.lt.s32.totalorder %v459, 0
        %vm504 = vcmp.lt.s32.totalorder %v466, 0
        %vm505 = vcmp.lt.s32.totalorder %v473, 0
        %vm506 = vmand %vm490, %vm474
        %vm507 = vmand %vm491, %vm475
        %vm508 = vmand %vm492, %vm476
        %vm509 = vmand %vm493, %vm477
        %vm510 = vmand %vm494, %vm478
        %vm511 = vmand %vm495, %vm479
        %vm512 = vmand %vm496, %vm480
        %vm513 = vmand %vm497, %vm481
        %vm514 = vmand %vm498, %vm482
        %vm515 = vmand %vm499, %vm483
        %vm516 = vmand %vm500, %vm484
        %vm517 = vmand %vm501, %vm485
        %vm518 = vmand %vm502, %vm486
        %vm519 = vmand %vm503, %vm487
        %vm520 = vmand %vm504, %vm488
        %vm521 = vmand %vm505, %vm489
        %v522 = vadd.s32 %v368, 16
        %v523 = vadd.s32 %v375, 16
        %v524 = vadd.s32 %v382, 16
        %v525 = vadd.s32 %v389, 16
        %v526 = vadd.s32 %v396, 16
        %v527 = vadd.s32 %v403, 16
        %v528 = vadd.s32 %v410, 16
        %v529 = vadd.s32 %v417, 16
        %v530 = vadd.s32 %v424, 16
        %v531 = vadd.s32 %v431, 16
        %v532 = vadd.s32 %v438, 16
        %v533 = vadd.s32 %v445, 16
        %v534 = vadd.s32 %v452, 16
        %v535 = vadd.s32 %v459, 16
        %v536 = vadd.s32 %v466, 16
        %v537 = vadd.s32 %v473, 16
        %v538 = vsel %vm506, %v522, %v368
        %v539 = vsel %vm507, %v523, %v375
        %v540 = vsel %vm508, %v524, %v382
        %v541 = vsel %vm509, %v525, %v389
        %v542 = vsel %vm510, %v526, %v396
        %v543 = vsel %vm511, %v527, %v403
        %v544 = vsel %vm512, %v528, %v410
        %v545 = vsel %vm513, %v529, %v417
        %v546 = vsel %vm514, %v530, %v424
        %v547 = vsel %vm515, %v531, %v431
        %v548 = vsel %vm516, %v532, %v438
        %v549 = vsel %vm517, %v533, %v445
        %v550 = vsel %vm518, %v534, %v452
        %v551 = vsel %vm519, %v535, %v459
        %v552 = vsel %vm520, %v536, %v466
        %v553 = vsel %vm521, %v537, %v473
        %vm554 = vcmp.ne.s32.totalorder %v538, 0
        %vm555 = vcmp.ne.s32.totalorder %v539, 0
        %vm556 = vcmp.ne.s32.totalorder %v540, 0
        %vm557 = vcmp.ne.s32.totalorder %v541, 0
        %vm558 = vcmp.ne.s32.totalorder %v542, 0
        %vm559 = vcmp.ne.s32.totalorder %v543, 0
        %vm560 = vcmp.ne.s32.totalorder %v544, 0
        %vm561 = vcmp.ne.s32.totalorder %v545, 0
        %vm562 = vcmp.ne.s32.totalorder %v546, 0
        %vm563 = vcmp.ne.s32.totalorder %v547, 0
        %vm564 = vcmp.ne.s32.totalorder %v548, 0
        %vm565 = vcmp.ne.s32.totalorder %v549, 0
        %vm566 = vcmp.ne.s32.totalorder %v550, 0
        %vm567 = vcmp.ne.s32.totalorder %v551, 0
        %vm568 = vcmp.ne.s32.totalorder %v552, 0
        %vm569 = vcmp.ne.s32.totalorder %v553, 0
        %vm570 = vcmp.ne.s32.totalorder %v538, 15
        %vm571 = vcmp.ne.s32.totalorder %v539, 15
        %vm572 = vcmp.ne.s32.totalorder %v540, 15
        %vm573 = vcmp.ne.s32.totalorder %v541, 15
        %vm574 = vcmp.ne.s32.totalorder %v542, 15
        %vm575 = vcmp.ne.s32.totalorder %v543, 15
        %vm576 = vcmp.ne.s32.totalorder %v544, 15
        %vm577 = vcmp.ne.s32.totalorder %v545, 15
        %vm578 = vcmp.ne.s32.totalorder %v546, 15
        %vm579 = vcmp.ne.s32.totalorder %v547, 15
        %vm580 = vcmp.ne.s32.totalorder %v548, 15
        %vm581 = vcmp.ne.s32.totalorder %v549, 15
        %vm582 = vcmp.ne.s32.totalorder %v550, 15
        %vm583 = vcmp.ne.s32.totalorder %v551, 15
        %vm584 = vcmp.ne.s32.totalorder %v552, 15
        %vm585 = vcmp.ne.s32.totalorder %v553, 15
        %v586 = vrot.slane %v329, 7
        %v587 = vrot.slane %v330, 7
        %v588 = vrot.slane %v331, 7
        %v589 = vrot.slane %v332, 7
        %v590 = vrot.slane %v333, 7
        %v591 = vrot.slane %v334, 7
        %v592 = vrot.slane %v335, 7
        %v593 = vrot.slane %v336, 7
        %v594 = vrot.slane %v337, 7
        %v595 = vrot.slane %v338, 7
        %v596 = vrot.slane %v339, 7
        %v597 = vrot.slane %v340, 7
        %v598 = vrot.slane %v341, 7
        %v599 = vrot.slane %v342, 7
        %v600 = vrot.slane %v343, 7
        %v601 = vrot.slane %v344, 7
        %vm602 = vcmp.lt.s32.totalorder %v346, 1
        %v603 = vsel %vm602, %v600, %v601
        %v604 = vsel %vm602, %v599, %v600
        %v605 = vsel %vm602, %v598, %v599
        %v606 = vsel %vm602, %v597, %v598
        %v607 = vsel %vm602, %v596, %v597
        %v608 = vsel %vm602, %v595, %v596
        %v609 = vsel %vm602, %v594, %v595
        %v610 = vsel %vm602, %v593, %v594
        %v611 = vsel %vm602, %v592, %v593
        %v612 = vsel %vm602, %v591, %v592
        %v613 = vsel %vm602, %v590, %v591
        %v614 = vsel %vm602, %v589, %v590
        %v615 = vsel %vm602, %v588, %v589
        %v616 = vsel %vm602, %v587, %v588
        %v617 = vsel %vm602, %v586, %v587
        %v618 = vsel %vm602, %v601, %v586
        %v619 = vsel %vm554, %v618, 0.0
        %v620 = vsel %vm555, %v617, 0.0
        %v621 = vsel %vm556, %v616, 0.0
        %v622 = vsel %vm557, %v615, 0.0
        %v623 = vsel %vm558, %v614, 0.0
        %v624 = vsel %vm559, %v613, 0.0
        %v625 = vsel %vm560, %v612, 0.0
        %v626 = vsel %vm561, %v611, 0.0
        %v627 = vsel %vm562, %v610, 0.0
        %v628 = vsel %vm563, %v609, 0.0
        %v629 = vsel %vm564, %v608, 0.0
        %v630 = vsel %vm565, %v607, 0.0
        %v631 = vsel %vm566, %v606, 0.0
        %v632 = vsel %vm567, %v605, 0.0
        %v633 = vsel %vm568, %v604, 0.0
        %v634 = vsel %vm569, %v603, 0.0
        %v635 = vrot.slane %v329, 1
        %v636 = vrot.slane %v330, 1
        %v637 = vrot.slane %v331, 1
        %v638 = vrot.slane %v332, 1
        %v639 = vrot.slane %v333, 1
        %v640 = vrot.slane %v334, 1
        %v641 = vrot.slane %v335, 1
        %v642 = vrot.slane %v336, 1
        %v643 = vrot.slane %v337, 1
        %v644 = vrot.slane %v338, 1
        %v645 = vrot.slane %v339, 1
        %v646 = vrot.slane %v340, 1
        %v647 = vrot.slane %v341, 1
        %v648 = vrot.slane %v342, 1
        %v649 = vrot.slane %v343, 1
        %v650 = vrot.slane %v344, 1
        %vm651 = vcmp.lt.s32.totalorder %v346, 7
        %v652 = vsel %vm651, %v649, %v650
        %v653 = vsel %vm651, %v648, %v649
        %v654 = vsel %vm651, %v647, %v648
        %v655 = vsel %vm651, %v646, %v647
        %v656 = vsel %vm651, %v645, %v646
        %v657 = vsel %vm651, %v644, %v645
        %v658 = vsel %vm651, %v643, %v644
        %v659 = vsel %vm651, %v642, %v643
        %v660 = vsel %vm651, %v641, %v642
        %v661 = vsel %vm651, %v640, %v641
        %v662 = vsel %vm651, %v639, %v640
        %v663 = vsel %vm651, %v638, %v639
        %v664 = vsel %vm651, %v637, %v638
        %v665 = vsel %vm651, %v636, %v637
        %v666 = vsel %vm651, %v635, %v636
        %v667 = vsel %vm651, %v650, %v635
        %v668 = vsel %vm570, %v666, 0.0
        %v669 = vsel %vm571, %v665, 0.0
        %v670 = vsel %vm572, %v664, 0.0
        %v671 = vsel %vm573, %v663, 0.0
        %v672 = vsel %vm574, %v662, 0.0
        %v673 = vsel %vm575, %v661, 0.0
        %v674 = vsel %vm576, %v660, 0.0
        %v675 = vsel %vm577, %v659, 0.0
        %v676 = vsel %vm578, %v658, 0.0
        %v677 = vsel %vm579, %v657, 0.0
        %v678 = vsel %vm580, %v656, 0.0
        %v679 = vsel %vm581, %v655, 0.0
        %v680 = vsel %vm582, %v654, 0.0
        %v681 = vsel %vm583, %v653, 0.0
        %v682 = vsel %vm584, %v652, 0.0
        %v683 = vsel %vm585, %v667, 0.0
        %v684 = vpack.c.bf16 %v620, %v619
        %v685 = vpack.c.bf16 %v622, %v621
        %v686 = vpack.c.bf16 %v624, %v623
        %v687 = vpack.c.bf16 %v626, %v625
        %v688 = vpack.c.bf16 %v628, %v627
        %v689 = vpack.c.bf16 %v630, %v629
        %v690 = vpack.c.bf16 %v632, %v631
        %v691 = vpack.c.bf16 %v634, %v633
        %v692 = vld [vmem:[#allocation5] sm:$0xf]
        %v693 = vld [vmem:[#allocation5 + $0x4] sm:$0xf]
        %v694 = vld [vmem:[#allocation5 + $0x8] sm:$0xf]
        %v695 = vld [vmem:[#allocation5 + $0xc] sm:$0xf]
        %v696 = vld [vmem:[#allocation5 + $0x10] sm:$0xf]
        %v697 = vld [vmem:[#allocation5 + $0x14] sm:$0xf]
        %v698 = vld [vmem:[#allocation5 + $0x18] sm:$0xf]
        %v699 = vld [vmem:[#allocation5 + $0x1c] sm:$0xf]
        %v700 = vld [vmem:[#allocation5 + $0x20] sm:$0xf]
        %v701 = vld [vmem:[#allocation5 + $0x24] sm:$0xf]
        %v702 = vld [vmem:[#allocation5 + $0x28] sm:$0xf]
        %v703 = vld [vmem:[#allocation5 + $0x2c] sm:$0xf]
        %v704 = vld [vmem:[#allocation5 + $0x30] sm:$0xf]
        %v705 = vld [vmem:[#allocation5 + $0x34] sm:$0xf]
        %v706 = vld [vmem:[#allocation5 + $0x38] sm:$0xf]
        %v707 = vld [vmem:[#allocation5 + $0x3c] sm:$0xf]
        %v708 = vpack.c.bf16 %v330, %v329
        %v709 = vpack.c.bf16 %v332, %v331
        %v710 = vpack.c.bf16 %v334, %v333
        %v711 = vpack.c.bf16 %v336, %v335
        %v712 = vpack.c.bf16 %v338, %v337
        %v713 = vpack.c.bf16 %v340, %v339
        %v714 = vpack.c.bf16 %v342, %v341
        %v715 = vpack.c.bf16 %v344, %v343
        %s716 = scalar_lea.vmem [#allocation5], 64
        %v717 = vld [vmem:[%s716] sm:$0xf]
        %v718 = vld [vmem:[%s716 + $0x4] sm:$0xf]
        %v719 = vld [vmem:[%s716 + $0x8] sm:$0xf]
        %v720 = vld [vmem:[%s716 + $0xc] sm:$0xf]
        %v721 = vld [vmem:[%s716 + $0x10] sm:$0xf]
        %v722 = vld [vmem:[%s716 + $0x14] sm:$0xf]
        %v723 = vld [vmem:[%s716 + $0x18] sm:$0xf]
        %v724 = vld [vmem:[%s716 + $0x1c] sm:$0xf]
        %v725 = vld [vmem:[%s716 + $0x20] sm:$0xf]
        %v726 = vld [vmem:[%s716 + $0x24] sm:$0xf]
        %v727 = vld [vmem:[%s716 + $0x28] sm:$0xf]
        %v728 = vld [vmem:[%s716 + $0x2c] sm:$0xf]
        %v729 = vld [vmem:[%s716 + $0x30] sm:$0xf]
        %v730 = vld [vmem:[%s716 + $0x34] sm:$0xf]
        %v731 = vld [vmem:[%s716 + $0x38] sm:$0xf]
        %v732 = vld [vmem:[%s716 + $0x3c] sm:$0xf]
        %v749 = vunpack.c.l.b16 %v717
        %v750 = vunpack.c.l.b16 %v718
        %v751 = vunpack.c.l.b16 %v719
        %v752 = vunpack.c.l.b16 %v720
        %v753 = vunpack.c.l.b16 %v721
        %v754 = vunpack.c.l.b16 %v722
        %v755 = vunpack.c.l.b16 %v723
        %v756 = vunpack.c.l.b16 %v724
        %v757 = vunpack.c.l.b16 %v725
        %v758 = vunpack.c.l.b16 %v726
        %v759 = vunpack.c.l.b16 %v727
        %v760 = vunpack.c.l.b16 %v728
        %v761 = vunpack.c.l.b16 %v729
        %v762 = vunpack.c.l.b16 %v730
        %v763 = vunpack.c.l.b16 %v731
        %v764 = vunpack.c.l.b16 %v732
        %v765 = vpack.c.b16 %v750, %v749
        %v766 = vpack.c.b16 %v752, %v751
        %v767 = vpack.c.b16 %v754, %v753
        %v768 = vpack.c.b16 %v756, %v755
        %v769 = vpack.c.b16 %v758, %v757
        %v770 = vpack.c.b16 %v760, %v759
        %v771 = vpack.c.b16 %v762, %v761
        %v772 = vpack.c.b16 %v764, %v763
        %781 = vmatprep.subr.bf16.mxu0 0
        %782 = vmatpush1.bf16.msra.mxu0 %v772
        %783 = vmatprep.subr.bf16.mxu0 0
        %784 = vmatpush1.bf16.msra.mxu0 %v771
        %785 = vmatprep.subr.bf16.mxu0 0
        %786 = vmatpush1.bf16.msra.mxu0 %v770
        %787 = vmatprep.subr.bf16.mxu0 0
        %788 = vmatpush1.bf16.msra.mxu0 %v769
        %789 = vmatprep.subr.bf16.mxu0 0
        %790 = vmatpush1.bf16.msra.mxu0 %v768
        %791 = vmatprep.subr.bf16.mxu0 0
        %792 = vmatpush1.bf16.msra.mxu0 %v767
        %793 = vmatprep.subr.bf16.mxu0 0
        %794 = vmatpush1.bf16.msra.mxu0 %v766
        %795 = vmatprep.subr.bf16.mxu0 0
        %796 = vmatpush1.bf16.msra.mxu0 %v765
        %797 = vmatprep.subr.bf16.mxu0 0
        %798 = vmatpush2.bf16.msra.mxu0 0
        %799 = vmatprep.subr.bf16.mxu0 0
        %800 = vmatpush2.bf16.msra.mxu0 0
        %801 = vmatprep.subr.bf16.mxu0 0
        %802 = vmatpush2.bf16.msra.mxu0 0
        %803 = vmatprep.subr.bf16.mxu0 0
        %804 = vmatpush2.bf16.msra.mxu0 0
        %805 = vmatprep.subr.bf16.mxu0 0
        %806 = vmatpush2.bf16.msra.mxu0 0
        %807 = vmatprep.subr.bf16.mxu0 0
        %808 = vmatpush2.bf16.msra.mxu0 0
        %809 = vmatprep.subr.bf16.mxu0 0
        %810 = vmatpush2.bf16.msra.mxu0 0
        %811 = vmatprep.subr.bf16.mxu0 0
        %812 = vmatpush2.bf16.msra.mxu0 0
        %813 = vmatprep.mubr.bf16.mxu0 0
        %814 = vmatmul.mubr.bf16.gmra.mxu0 %v708
        %v815 = vpop.f32.mrf.mxu0
        %v816 = vadd.f32 0.0, %v815
        %v817 = vpop.f32.mrf.mxu0
        %v818 = vpop.f32.mrf.mxu0
        %v819 = vadd.f32 0.0, %v818
        %v820 = vpop.f32.mrf.mxu0
        %821 = vmatprep.mubr.bf16.mxu0 0
        %822 = vmatmul.mubr.bf16.gmra.mxu0 %v709
        %v823 = vpop.f32.mrf.mxu0
        %v824 = vadd.f32 0.0, %v823
        %v825 = vpop.f32.mrf.mxu0
        %v826 = vpop.f32.mrf.mxu0
        %v827 = vadd.f32 0.0, %v826
        %v828 = vpop.f32.mrf.mxu0
        %829 = vmatprep.mubr.bf16.mxu0 0
        %830 = vmatmul.mubr.bf16.gmra.mxu0 %v710
        %v831 = vpop.f32.mrf.mxu0
        %v832 = vadd.f32 0.0, %v831
        %v833 = vpop.f32.mrf.mxu0
        %v834 = vpop.f32.mrf.mxu0
        %v835 = vadd.f32 0.0, %v834
        %v836 = vpop.f32.mrf.mxu0
        %837 = vmatprep.mubr.bf16.mxu0 0
        %838 = vmatmul.mubr.bf16.gmra.mxu0 %v711
        %v839 = vpop.f32.mrf.mxu0
        %v840 = vadd.f32 0.0, %v839
        %v841 = vpop.f32.mrf.mxu0
        %v842 = vpop.f32.mrf.mxu0
        %v843 = vadd.f32 0.0, %v842
        %v844 = vpop.f32.mrf.mxu0
        %845 = vmatprep.mubr.bf16.mxu0 0
        %846 = vmatmul.mubr.bf16.gmra.mxu0 %v712
        %v847 = vpop.f32.mrf.mxu0
        %v848 = vadd.f32 0.0, %v847
        %v849 = vpop.f32.mrf.mxu0
        %v850 = vpop.f32.mrf.mxu0
        %v851 = vadd.f32 0.0, %v850
        %v852 = vpop.f32.mrf.mxu0
        %853 = vmatprep.mubr.bf16.mxu0 0
        %854 = vmatmul.mubr.bf16.gmra.mxu0 %v713
        %v855 = vpop.f32.mrf.mxu0
        %v856 = vadd.f32 0.0, %v855
        %v857 = vpop.f32.mrf.mxu0
        %v858 = vpop.f32.mrf.mxu0
        %v859 = vadd.f32 0.0, %v858
        %v860 = vpop.f32.mrf.mxu0
        %861 = vmatprep.mubr.bf16.mxu0 0
        %862 = vmatmul.mubr.bf16.gmra.mxu0 %v714
        %v863 = vpop.f32.mrf.mxu0
        %v864 = vadd.f32 0.0, %v863
        %v865 = vpop.f32.mrf.mxu0
        %v866 = vpop.f32.mrf.mxu0
        %v867 = vadd.f32 0.0, %v866
        %v868 = vpop.f32.mrf.mxu0
        %869 = vmatprep.mubr.bf16.mxu0 0
        %870 = vmatmul.mubr.bf16.gmra.mxu0 %v715
        %v871 = vpop.f32.mrf.mxu0
        %v872 = vadd.f32 0.0, %v871
        %v873 = vpop.f32.mrf.mxu0
        %v874 = vpop.f32.mrf.mxu0
        %v875 = vadd.f32 0.0, %v874
        %v876 = vpop.f32.mrf.mxu0
        %877 = vdwg.mxu0
        %v894 = vunpack.c.l.b16 %v692
        %v895 = vunpack.c.l.b16 %v693
        %v896 = vunpack.c.l.b16 %v694
        %v897 = vunpack.c.l.b16 %v695
        %v898 = vunpack.c.l.b16 %v696
        %v899 = vunpack.c.l.b16 %v697
        %v900 = vunpack.c.l.b16 %v698
        %v901 = vunpack.c.l.b16 %v699
        %v902 = vunpack.c.l.b16 %v700
        %v903 = vunpack.c.l.b16 %v701
        %v904 = vunpack.c.l.b16 %v702
        %v905 = vunpack.c.l.b16 %v703
        %v906 = vunpack.c.l.b16 %v704
        %v907 = vunpack.c.l.b16 %v705
        %v908 = vunpack.c.l.b16 %v706
        %v909 = vunpack.c.l.b16 %v707
        %v910 = vpack.c.b16 %v895, %v894
        %v911 = vpack.c.b16 %v897, %v896
        %v912 = vpack.c.b16 %v899, %v898
        %v913 = vpack.c.b16 %v901, %v900
        %v914 = vpack.c.b16 %v903, %v902
        %v915 = vpack.c.b16 %v905, %v904
        %v916 = vpack.c.b16 %v907, %v906
        %v917 = vpack.c.b16 %v909, %v908
        %926 = vmatprep.subr.bf16.mxu0 0
        %927 = vmatpush1.bf16.msra.mxu0 %v917
        %928 = vmatprep.subr.bf16.mxu0 0
        %929 = vmatpush1.bf16.msra.mxu0 %v916
        %930 = vmatprep.subr.bf16.mxu0 0
        %931 = vmatpush1.bf16.msra.mxu0 %v915
        %932 = vmatprep.subr.bf16.mxu0 0
        %933 = vmatpush1.bf16.msra.mxu0 %v914
        %934 = vmatprep.subr.bf16.mxu0 0
        %935 = vmatpush1.bf16.msra.mxu0 %v913
        %936 = vmatprep.subr.bf16.mxu0 0
        %937 = vmatpush1.bf16.msra.mxu0 %v912
        %938 = vmatprep.subr.bf16.mxu0 0
        %939 = vmatpush1.bf16.msra.mxu0 %v911
        %940 = vmatprep.subr.bf16.mxu0 0
        %941 = vmatpush1.bf16.msra.mxu0 %v910
        %942 = vmatprep.subr.bf16.mxu0 0
        %943 = vmatpush2.bf16.msra.mxu0 0
        %944 = vmatprep.subr.bf16.mxu0 0
        %945 = vmatpush2.bf16.msra.mxu0 0
        %946 = vmatprep.subr.bf16.mxu0 0
        %947 = vmatpush2.bf16.msra.mxu0 0
        %948 = vmatprep.subr.bf16.mxu0 0
        %949 = vmatpush2.bf16.msra.mxu0 0
        %950 = vmatprep.subr.bf16.mxu0 0
        %951 = vmatpush2.bf16.msra.mxu0 0
        %952 = vmatprep.subr.bf16.mxu0 0
        %953 = vmatpush2.bf16.msra.mxu0 0
        %954 = vmatprep.subr.bf16.mxu0 0
        %955 = vmatpush2.bf16.msra.mxu0 0
        %956 = vmatprep.subr.bf16.mxu0 0
        %957 = vmatpush2.bf16.msra.mxu0 0
        %958 = vmatprep.mubr.bf16.mxu0 0
        %959 = vmatmul.mubr.bf16.gmra.mxu0 %v684
        %v960 = vpop.f32.mrf.mxu0
        %v961 = vadd.f32 %v816, %v960
        %v962 = vpop.f32.mrf.mxu0
        %v963 = vpop.f32.mrf.mxu0
        %v964 = vadd.f32 %v819, %v963
        %v965 = vpop.f32.mrf.mxu0
        %966 = vmatprep.mubr.bf16.mxu0 0
        %967 = vmatmul.mubr.bf16.gmra.mxu0 %v685
        %v968 = vpop.f32.mrf.mxu0
        %v969 = vadd.f32 %v824, %v968
        %v970 = vpop.f32.mrf.mxu0
        %v971 = vpop.f32.mrf.mxu0
        %v972 = vadd.f32 %v827, %v971
        %v973 = vpop.f32.mrf.mxu0
        %974 = vmatprep.mubr.bf16.mxu0 0
        %975 = vmatmul.mubr.bf16.gmra.mxu0 %v686
        %v976 = vpop.f32.mrf.mxu0
        %v977 = vadd.f32 %v832, %v976
        %v978 = vpop.f32.mrf.mxu0
        %v979 = vpop.f32.mrf.mxu0
        %v980 = vadd.f32 %v835, %v979
        %v981 = vpop.f32.mrf.mxu0
        %982 = vmatprep.mubr.bf16.mxu0 0
        %983 = vmatmul.mubr.bf16.gmra.mxu0 %v687
        %v984 = vpop.f32.mrf.mxu0
        %v985 = vadd.f32 %v840, %v984
        %v986 = vpop.f32.mrf.mxu0
        %v987 = vpop.f32.mrf.mxu0
        %v988 = vadd.f32 %v843, %v987
        %v989 = vpop.f32.mrf.mxu0
        %990 = vmatprep.mubr.bf16.mxu0 0
        %991 = vmatmul.mubr.bf16.gmra.mxu0 %v688
        %v992 = vpop.f32.mrf.mxu0
        %v993 = vadd.f32 %v848, %v992
        %v994 = vpop.f32.mrf.mxu0
        %v995 = vpop.f32.mrf.mxu0
        %v996 = vadd.f32 %v851, %v995
        %v997 = vpop.f32.mrf.mxu0
        %998 = vmatprep.mubr.bf16.mxu0 0
        %999 = vmatmul.mubr.bf16.gmra.mxu0 %v689
        %v1000 = vpop.f32.mrf.mxu0
        %v1001 = vadd.f32 %v856, %v1000
        %v1002 = vpop.f32.mrf.mxu0
        %v1003 = vpop.f32.mrf.mxu0
        %v1004 = vadd.f32 %v859, %v1003
        %v1005 = vpop.f32.mrf.mxu0
        %1006 = vmatprep.mubr.bf16.mxu0 0
        %1007 = vmatmul.mubr.bf16.gmra.mxu0 %v690
        %v1008 = vpop.f32.mrf.mxu0
        %v1009 = vadd.f32 %v864, %v1008
        %v1010 = vpop.f32.mrf.mxu0
        %v1011 = vpop.f32.mrf.mxu0
        %v1012 = vadd.f32 %v867, %v1011
        %v1013 = vpop.f32.mrf.mxu0
        %1014 = vmatprep.mubr.bf16.mxu0 0
        %1015 = vmatmul.mubr.bf16.gmra.mxu0 %v691
        %v1016 = vpop.f32.mrf.mxu0
        %v1017 = vadd.f32 %v872, %v1016
        %v1018 = vpop.f32.mrf.mxu0
        %v1019 = vpop.f32.mrf.mxu0
        %v1020 = vadd.f32 %v875, %v1019
        %v1021 = vpop.f32.mrf.mxu0
        %1022 = vdwg.mxu0
        %v1023 = vpack.c.bf16 %v669, %v668
        %v1024 = vpack.c.bf16 %v671, %v670
        %v1025 = vpack.c.bf16 %v673, %v672
        %v1026 = vpack.c.bf16 %v675, %v674
        %v1027 = vpack.c.bf16 %v677, %v676
        %v1028 = vpack.c.bf16 %v679, %v678
        %v1029 = vpack.c.bf16 %v681, %v680
        %v1030 = vpack.c.bf16 %v683, %v682
        %s1031 = scalar_lea.vmem [#allocation5], 128
        %v1032 = vld [vmem:[%s1031] sm:$0xf]
        %v1033 = vld [vmem:[%s1031 + $0x4] sm:$0xf]
        %v1034 = vld [vmem:[%s1031 + $0x8] sm:$0xf]
        %v1035 = vld [vmem:[%s1031 + $0xc] sm:$0xf]
        %v1036 = vld [vmem:[%s1031 + $0x10] sm:$0xf]
        %v1037 = vld [vmem:[%s1031 + $0x14] sm:$0xf]
        %v1038 = vld [vmem:[%s1031 + $0x18] sm:$0xf]
        %v1039 = vld [vmem:[%s1031 + $0x1c] sm:$0xf]
        %v1040 = vld [vmem:[%s1031 + $0x20] sm:$0xf]
        %v1041 = vld [vmem:[%s1031 + $0x24] sm:$0xf]
        %v1042 = vld [vmem:[%s1031 + $0x28] sm:$0xf]
        %v1043 = vld [vmem:[%s1031 + $0x2c] sm:$0xf]
        %v1044 = vld [vmem:[%s1031 + $0x30] sm:$0xf]
        %v1045 = vld [vmem:[%s1031 + $0x34] sm:$0xf]
        %v1046 = vld [vmem:[%s1031 + $0x38] sm:$0xf]
        %v1047 = vld [vmem:[%s1031 + $0x3c] sm:$0xf]
        %v1064 = vunpack.c.l.b16 %v1032
        %v1065 = vunpack.c.l.b16 %v1033
        %v1066 = vunpack.c.l.b16 %v1034
        %v1067 = vunpack.c.l.b16 %v1035
        %v1068 = vunpack.c.l.b16 %v1036
        %v1069 = vunpack.c.l.b16 %v1037
        %v1070 = vunpack.c.l.b16 %v1038
        %v1071 = vunpack.c.l.b16 %v1039
        %v1072 = vunpack.c.l.b16 %v1040
        %v1073 = vunpack.c.l.b16 %v1041
        %v1074 = vunpack.c.l.b16 %v1042
        %v1075 = vunpack.c.l.b16 %v1043
        %v1076 = vunpack.c.l.b16 %v1044
        %v1077 = vunpack.c.l.b16 %v1045
        %v1078 = vunpack.c.l.b16 %v1046
        %v1079 = vunpack.c.l.b16 %v1047
        %v1080 = vpack.c.b16 %v1065, %v1064
        %v1081 = vpack.c.b16 %v1067, %v1066
        %v1082 = vpack.c.b16 %v1069, %v1068
        %v1083 = vpack.c.b16 %v1071, %v1070
        %v1084 = vpack.c.b16 %v1073, %v1072
        %v1085 = vpack.c.b16 %v1075, %v1074
        %v1086 = vpack.c.b16 %v1077, %v1076
        %v1087 = vpack.c.b16 %v1079, %v1078
        %1096 = vmatprep.subr.bf16.mxu0 0
        %1097 = vmatpush1.bf16.msra.mxu0 %v1087
        %1098 = vmatprep.subr.bf16.mxu0 0
        %1099 = vmatpush1.bf16.msra.mxu0 %v1086
        %1100 = vmatprep.subr.bf16.mxu0 0
        %1101 = vmatpush1.bf16.msra.mxu0 %v1085
        %1102 = vmatprep.subr.bf16.mxu0 0
        %1103 = vmatpush1.bf16.msra.mxu0 %v1084
        %1104 = vmatprep.subr.bf16.mxu0 0
        %1105 = vmatpush1.bf16.msra.mxu0 %v1083
        %1106 = vmatprep.subr.bf16.mxu0 0
        %1107 = vmatpush1.bf16.msra.mxu0 %v1082
        %1108 = vmatprep.subr.bf16.mxu0 0
        %1109 = vmatpush1.bf16.msra.mxu0 %v1081
        %1110 = vmatprep.subr.bf16.mxu0 0
        %1111 = vmatpush1.bf16.msra.mxu0 %v1080
        %1112 = vmatprep.subr.bf16.mxu0 0
        %1113 = vmatpush2.bf16.msra.mxu0 0
        %1114 = vmatprep.subr.bf16.mxu0 0
        %1115 = vmatpush2.bf16.msra.mxu0 0
        %1116 = vmatprep.subr.bf16.mxu0 0
        %1117 = vmatpush2.bf16.msra.mxu0 0
        %1118 = vmatprep.subr.bf16.mxu0 0
        %1119 = vmatpush2.bf16.msra.mxu0 0
        %1120 = vmatprep.subr.bf16.mxu0 0
        %1121 = vmatpush2.bf16.msra.mxu0 0
        %1122 = vmatprep.subr.bf16.mxu0 0
        %1123 = vmatpush2.bf16.msra.mxu0 0
        %1124 = vmatprep.subr.bf16.mxu0 0
        %1125 = vmatpush2.bf16.msra.mxu0 0
        %1126 = vmatprep.subr.bf16.mxu0 0
        %1127 = vmatpush2.bf16.msra.mxu0 0
        %1128 = vmatprep.mubr.bf16.mxu0 0
        %1129 = vmatmul.mubr.bf16.gmra.mxu0 %v1023
        %v1130 = vpop.f32.mrf.mxu0
        %v1131 = vadd.f32 0.0, %v1130
        %v1132 = vpop.f32.mrf.mxu0
        %v1133 = vpop.f32.mrf.mxu0
        %v1134 = vadd.f32 0.0, %v1133
        %v1135 = vpop.f32.mrf.mxu0
        %1136 = vmatprep.mubr.bf16.mxu0 0
        %1137 = vmatmul.mubr.bf16.gmra.mxu0 %v1024
        %v1138 = vpop.f32.mrf.mxu0
        %v1139 = vadd.f32 0.0, %v1138
        %v1140 = vpop.f32.mrf.mxu0
        %v1141 = vpop.f32.mrf.mxu0
        %v1142 = vadd.f32 0.0, %v1141
        %v1143 = vpop.f32.mrf.mxu0
        %1144 = vmatprep.mubr.bf16.mxu0 0
        %1145 = vmatmul.mubr.bf16.gmra.mxu0 %v1025
        %v1146 = vpop.f32.mrf.mxu0
        %v1147 = vadd.f32 0.0, %v1146
        %v1148 = vpop.f32.mrf.mxu0
        %v1149 = vpop.f32.mrf.mxu0
        %v1150 = vadd.f32 0.0, %v1149
        %v1151 = vpop.f32.mrf.mxu0
        %1152 = vmatprep.mubr.bf16.mxu0 0
        %1153 = vmatmul.mubr.bf16.gmra.mxu0 %v1026
        %v1154 = vpop.f32.mrf.mxu0
        %v1155 = vadd.f32 0.0, %v1154
        %v1156 = vpop.f32.mrf.mxu0
        %v1157 = vpop.f32.mrf.mxu0
        %v1158 = vadd.f32 0.0, %v1157
        %v1159 = vpop.f32.mrf.mxu0
        %1160 = vmatprep.mubr.bf16.mxu0 0
        %1161 = vmatmul.mubr.bf16.gmra.mxu0 %v1027
        %v1162 = vpop.f32.mrf.mxu0
        %v1163 = vadd.f32 0.0, %v1162
        %v1164 = vpop.f32.mrf.mxu0
        %v1165 = vpop.f32.mrf.mxu0
        %v1166 = vadd.f32 0.0, %v1165
        %v1167 = vpop.f32.mrf.mxu0
        %1168 = vmatprep.mubr.bf16.mxu0 0
        %1169 = vmatmul.mubr.bf16.gmra.mxu0 %v1028
        %v1170 = vpop.f32.mrf.mxu0
        %v1171 = vadd.f32 0.0, %v1170
        %v1172 = vpop.f32.mrf.mxu0
        %v1173 = vpop.f32.mrf.mxu0
        %v1174 = vadd.f32 0.0, %v1173
        %v1175 = vpop.f32.mrf.mxu0
        %1176 = vmatprep.mubr.bf16.mxu0 0
        %1177 = vmatmul.mubr.bf16.gmra.mxu0 %v1029
        %v1178 = vpop.f32.mrf.mxu0
        %v1179 = vadd.f32 0.0, %v1178
        %v1180 = vpop.f32.mrf.mxu0
        %v1181 = vpop.f32.mrf.mxu0
        %v1182 = vadd.f32 0.0, %v1181
        %v1183 = vpop.f32.mrf.mxu0
        %1184 = vmatprep.mubr.bf16.mxu0 0
        %1185 = vmatmul.mubr.bf16.gmra.mxu0 %v1030
        %v1186 = vpop.f32.mrf.mxu0
        %v1187 = vadd.f32 0.0, %v1186
        %v1188 = vpop.f32.mrf.mxu0
        %v1189 = vpop.f32.mrf.mxu0
        %v1190 = vadd.f32 0.0, %v1189
        %v1191 = vpop.f32.mrf.mxu0
        %1192 = vdwg.mxu0
        %v1193 = vadd.f32 %v961, %v1131
        %v1194 = vadd.f32 %v964, %v1134
        %v1195 = vadd.f32 %v969, %v1139
        %v1196 = vadd.f32 %v972, %v1142
        %v1197 = vadd.f32 %v977, %v1147
        %v1198 = vadd.f32 %v980, %v1150
        %v1199 = vadd.f32 %v985, %v1155
        %v1200 = vadd.f32 %v988, %v1158
        %v1201 = vadd.f32 %v993, %v1163
        %v1202 = vadd.f32 %v996, %v1166
        %v1203 = vadd.f32 %v1001, %v1171
        %v1204 = vadd.f32 %v1004, %v1174
        %v1205 = vadd.f32 %v1009, %v1179
        %v1206 = vadd.f32 %v1012, %v1182
        %v1207 = vadd.f32 %v1017, %v1187
        %v1208 = vadd.f32 %v1020, %v1190
        %v1209 = vld [vmem:[%s2] sm:$0x1]
        %v1211 = vlaneseq
        %v1212 = vshrl.u32 %v1211, 7
        %v1213 = vsub.s32 0, %v1212
        %v1214 = vrot.slane %v1209, %v1213
        %v1216 = vmul.f32 %v1193, %v1214
        %v1217 = vmul.f32 %v1194, %v1214
        %v1218 = vmul.f32 %v1195, %v1214
        %v1219 = vmul.f32 %v1196, %v1214
        %v1220 = vmul.f32 %v1197, %v1214
        %v1221 = vmul.f32 %v1198, %v1214
        %v1222 = vmul.f32 %v1199, %v1214
        %v1223 = vmul.f32 %v1200, %v1214
        %v1224 = vmul.f32 %v1201, %v1214
        %v1225 = vmul.f32 %v1202, %v1214
        %v1226 = vmul.f32 %v1203, %v1214
        %v1227 = vmul.f32 %v1204, %v1214
        %v1228 = vmul.f32 %v1205, %v1214
        %v1229 = vmul.f32 %v1206, %v1214
        %v1230 = vmul.f32 %v1207, %v1214
        %v1231 = vmul.f32 %v1208, %v1214
        %v1232 = vld [vmem:[%s3] sm:$0x1]
        %v1234 = vlaneseq
        %v1235 = vshrl.u32 %v1234, 7
        %v1236 = vsub.s32 0, %v1235
        %v1237 = vrot.slane %v1232, %v1236
        %v1239 = vadd.f32 %v1216, %v1237
        %v1240 = vadd.f32 %v1217, %v1237
        %v1241 = vadd.f32 %v1218, %v1237
        %v1242 = vadd.f32 %v1219, %v1237
        %v1243 = vadd.f32 %v1220, %v1237
        %v1244 = vadd.f32 %v1221, %v1237
        %v1245 = vadd.f32 %v1222, %v1237
        %v1246 = vadd.f32 %v1223, %v1237
        %v1247 = vadd.f32 %v1224, %v1237
        %v1248 = vadd.f32 %v1225, %v1237
        %v1249 = vadd.f32 %v1226, %v1237
        %v1250 = vadd.f32 %v1227, %v1237
        %v1251 = vadd.f32 %v1228, %v1237
        %v1252 = vadd.f32 %v1229, %v1237
        %v1253 = vadd.f32 %v1230, %v1237
        %v1254 = vadd.f32 %v1231, %v1237
        %v1255 = vmax.f32 %v1239, 0.0
        %v1256 = vmax.f32 %v1240, 0.0
        %v1257 = vmax.f32 %v1241, 0.0
        %v1258 = vmax.f32 %v1242, 0.0
        %v1259 = vmax.f32 %v1243, 0.0
        %v1260 = vmax.f32 %v1244, 0.0
        %v1261 = vmax.f32 %v1245, 0.0
        %v1262 = vmax.f32 %v1246, 0.0
        %v1263 = vmax.f32 %v1247, 0.0
        %v1264 = vmax.f32 %v1248, 0.0
        %v1265 = vmax.f32 %v1249, 0.0
        %v1266 = vmax.f32 %v1250, 0.0
        %v1267 = vmax.f32 %v1251, 0.0
        %v1268 = vmax.f32 %v1252, 0.0
        %v1269 = vmax.f32 %v1253, 0.0
        %v1270 = vmax.f32 %v1254, 0.0
        %v1271 = vrot.slane %v1255, 7
        %v1272 = vrot.slane %v1256, 7
        %v1273 = vrot.slane %v1257, 7
        %v1274 = vrot.slane %v1258, 7
        %v1275 = vrot.slane %v1259, 7
        %v1276 = vrot.slane %v1260, 7
        %v1277 = vrot.slane %v1261, 7
        %v1278 = vrot.slane %v1262, 7
        %v1279 = vrot.slane %v1263, 7
        %v1280 = vrot.slane %v1264, 7
        %v1281 = vrot.slane %v1265, 7
        %v1282 = vrot.slane %v1266, 7
        %v1283 = vrot.slane %v1267, 7
        %v1284 = vrot.slane %v1268, 7
        %v1285 = vrot.slane %v1269, 7
        %v1286 = vrot.slane %v1270, 7
        %v1287 = vsel %vm602, %v1285, %v1286
        %v1288 = vsel %vm602, %v1284, %v1285
        %v1289 = vsel %vm602, %v1283, %v1284
        %v1290 = vsel %vm602, %v1282, %v1283
        %v1291 = vsel %vm602, %v1281, %v1282
        %v1292 = vsel %vm602, %v1280, %v1281
        %v1293 = vsel %vm602, %v1279, %v1280
        %v1294 = vsel %vm602, %v1278, %v1279
        %v1295 = vsel %vm602, %v1277, %v1278
        %v1296 = vsel %vm602, %v1276, %v1277
        %v1297 = vsel %vm602, %v1275, %v1276
        %v1298 = vsel %vm602, %v1274, %v1275
        %v1299 = vsel %vm602, %v1273, %v1274
        %v1300 = vsel %vm602, %v1272, %v1273
        %v1301 = vsel %vm602, %v1271, %v1272
        %v1302 = vsel %vm602, %v1286, %v1271
        %v1303 = vsel %vm554, %v1302, 0.0
        %v1304 = vsel %vm555, %v1301, 0.0
        %v1305 = vsel %vm556, %v1300, 0.0
        %v1306 = vsel %vm557, %v1299, 0.0
        %v1307 = vsel %vm558, %v1298, 0.0
        %v1308 = vsel %vm559, %v1297, 0.0
        %v1309 = vsel %vm560, %v1296, 0.0
        %v1310 = vsel %vm561, %v1295, 0.0
        %v1311 = vsel %vm562, %v1294, 0.0
        %v1312 = vsel %vm563, %v1293, 0.0
        %v1313 = vsel %vm564, %v1292, 0.0
        %v1314 = vsel %vm565, %v1291, 0.0
        %v1315 = vsel %vm566, %v1290, 0.0
        %v1316 = vsel %vm567, %v1289, 0.0
        %v1317 = vsel %vm568, %v1288, 0.0
        %v1318 = vsel %vm569, %v1287, 0.0
        %v1319 = vrot.slane %v1255, 1
        %v1320 = vrot.slane %v1256, 1
        %v1321 = vrot.slane %v1257, 1
        %v1322 = vrot.slane %v1258, 1
        %v1323 = vrot.slane %v1259, 1
        %v1324 = vrot.slane %v1260, 1
        %v1325 = vrot.slane %v1261, 1
        %v1326 = vrot.slane %v1262, 1
        %v1327 = vrot.slane %v1263, 1
        %v1328 = vrot.slane %v1264, 1
        %v1329 = vrot.slane %v1265, 1
        %v1330 = vrot.slane %v1266, 1
        %v1331 = vrot.slane %v1267, 1
        %v1332 = vrot.slane %v1268, 1
        %v1333 = vrot.slane %v1269, 1
        %v1334 = vrot.slane %v1270, 1
        %v1335 = vsel %vm651, %v1333, %v1334
        %v1336 = vsel %vm651, %v1332, %v1333
        %v1337 = vsel %vm651, %v1331, %v1332
        %v1338 = vsel %vm651, %v1330, %v1331
        %v1339 = vsel %vm651, %v1329, %v1330
        %v1340 = vsel %vm651, %v1328, %v1329
        %v1341 = vsel %vm651, %v1327, %v1328
        %v1342 = vsel %vm651, %v1326, %v1327
        %v1343 = vsel %vm651, %v1325, %v1326
        %v1344 = vsel %vm651, %v1324, %v1325
        %v1345 = vsel %vm651, %v1323, %v1324
        %v1346 = vsel %vm651, %v1322, %v1323
        %v1347 = vsel %vm651, %v1321, %v1322
        %v1348 = vsel %vm651, %v1320, %v1321
        %v1349 = vsel %vm651, %v1319, %v1320
        %v1350 = vsel %vm651, %v1334, %v1319
        %v1351 = vsel %vm570, %v1349, 0.0
        %v1352 = vsel %vm571, %v1348, 0.0
        %v1353 = vsel %vm572, %v1347, 0.0
        %v1354 = vsel %vm573, %v1346, 0.0
        %v1355 = vsel %vm574, %v1345, 0.0
        %v1356 = vsel %vm575, %v1344, 0.0
        %v1357 = vsel %vm576, %v1343, 0.0
        %v1358 = vsel %vm577, %v1342, 0.0
        %v1359 = vsel %vm578, %v1341, 0.0
        %v1360 = vsel %vm579, %v1340, 0.0
        %v1361 = vsel %vm580, %v1339, 0.0
        %v1362 = vsel %vm581, %v1338, 0.0
        %v1363 = vsel %vm582, %v1337, 0.0
        %v1364 = vsel %vm583, %v1336, 0.0
        %v1365 = vsel %vm584, %v1335, 0.0
        %v1366 = vsel %vm585, %v1350, 0.0
        %v1367 = vpack.c.bf16 %v1304, %v1303
        %v1368 = vpack.c.bf16 %v1306, %v1305
        %v1369 = vpack.c.bf16 %v1308, %v1307
        %v1370 = vpack.c.bf16 %v1310, %v1309
        %v1371 = vpack.c.bf16 %v1312, %v1311
        %v1372 = vpack.c.bf16 %v1314, %v1313
        %v1373 = vpack.c.bf16 %v1316, %v1315
        %v1374 = vpack.c.bf16 %v1318, %v1317
        %v1375 = vld [vmem:[#allocation7] sm:$0xf]
        %v1376 = vld [vmem:[#allocation7 + $0x4] sm:$0xf]
        %v1377 = vld [vmem:[#allocation7 + $0x8] sm:$0xf]
        %v1378 = vld [vmem:[#allocation7 + $0xc] sm:$0xf]
        %v1379 = vld [vmem:[#allocation7 + $0x10] sm:$0xf]
        %v1380 = vld [vmem:[#allocation7 + $0x14] sm:$0xf]
        %v1381 = vld [vmem:[#allocation7 + $0x18] sm:$0xf]
        %v1382 = vld [vmem:[#allocation7 + $0x1c] sm:$0xf]
        %v1383 = vld [vmem:[#allocation7 + $0x20] sm:$0xf]
        %v1384 = vld [vmem:[#allocation7 + $0x24] sm:$0xf]
        %v1385 = vld [vmem:[#allocation7 + $0x28] sm:$0xf]
        %v1386 = vld [vmem:[#allocation7 + $0x2c] sm:$0xf]
        %v1387 = vld [vmem:[#allocation7 + $0x30] sm:$0xf]
        %v1388 = vld [vmem:[#allocation7 + $0x34] sm:$0xf]
        %v1389 = vld [vmem:[#allocation7 + $0x38] sm:$0xf]
        %v1390 = vld [vmem:[#allocation7 + $0x3c] sm:$0xf]
        %v1391 = vpack.c.bf16 %v1256, %v1255
        %v1392 = vpack.c.bf16 %v1258, %v1257
        %v1393 = vpack.c.bf16 %v1260, %v1259
        %v1394 = vpack.c.bf16 %v1262, %v1261
        %v1395 = vpack.c.bf16 %v1264, %v1263
        %v1396 = vpack.c.bf16 %v1266, %v1265
        %v1397 = vpack.c.bf16 %v1268, %v1267
        %v1398 = vpack.c.bf16 %v1270, %v1269
        %s1399 = scalar_lea.vmem [#allocation7], 64
        %v1400 = vld [vmem:[%s1399] sm:$0xf]
        %v1401 = vld [vmem:[%s1399 + $0x4] sm:$0xf]
        %v1402 = vld [vmem:[%s1399 + $0x8] sm:$0xf]
        %v1403 = vld [vmem:[%s1399 + $0xc] sm:$0xf]
        %v1404 = vld [vmem:[%s1399 + $0x10] sm:$0xf]
        %v1405 = vld [vmem:[%s1399 + $0x14] sm:$0xf]
        %v1406 = vld [vmem:[%s1399 + $0x18] sm:$0xf]
        %v1407 = vld [vmem:[%s1399 + $0x1c] sm:$0xf]
        %v1408 = vld [vmem:[%s1399 + $0x20] sm:$0xf]
        %v1409 = vld [vmem:[%s1399 + $0x24] sm:$0xf]
        %v1410 = vld [vmem:[%s1399 + $0x28] sm:$0xf]
        %v1411 = vld [vmem:[%s1399 + $0x2c] sm:$0xf]
        %v1412 = vld [vmem:[%s1399 + $0x30] sm:$0xf]
        %v1413 = vld [vmem:[%s1399 + $0x34] sm:$0xf]
        %v1414 = vld [vmem:[%s1399 + $0x38] sm:$0xf]
        %v1415 = vld [vmem:[%s1399 + $0x3c] sm:$0xf]
        %v1432 = vunpack.c.l.b16 %v1400
        %v1433 = vunpack.c.l.b16 %v1401
        %v1434 = vunpack.c.l.b16 %v1402
        %v1435 = vunpack.c.l.b16 %v1403
        %v1436 = vunpack.c.l.b16 %v1404
        %v1437 = vunpack.c.l.b16 %v1405
        %v1438 = vunpack.c.l.b16 %v1406
        %v1439 = vunpack.c.l.b16 %v1407
        %v1440 = vunpack.c.l.b16 %v1408
        %v1441 = vunpack.c.l.b16 %v1409
        %v1442 = vunpack.c.l.b16 %v1410
        %v1443 = vunpack.c.l.b16 %v1411
        %v1444 = vunpack.c.l.b16 %v1412
        %v1445 = vunpack.c.l.b16 %v1413
        %v1446 = vunpack.c.l.b16 %v1414
        %v1447 = vunpack.c.l.b16 %v1415
        %v1448 = vpack.c.b16 %v1433, %v1432
        %v1449 = vpack.c.b16 %v1435, %v1434
        %v1450 = vpack.c.b16 %v1437, %v1436
        %v1451 = vpack.c.b16 %v1439, %v1438
        %v1452 = vpack.c.b16 %v1441, %v1440
        %v1453 = vpack.c.b16 %v1443, %v1442
        %v1454 = vpack.c.b16 %v1445, %v1444
        %v1455 = vpack.c.b16 %v1447, %v1446
        %1464 = vmatprep.subr.bf16.mxu0 0
        %1465 = vmatpush1.bf16.msra.mxu0 %v1455
        %1466 = vmatprep.subr.bf16.mxu0 0
        %1467 = vmatpush1.bf16.msra.mxu0 %v1454
        %1468 = vmatprep.subr.bf16.mxu0 0
        %1469 = vmatpush1.bf16.msra.mxu0 %v1453
        %1470 = vmatprep.subr.bf16.mxu0 0
        %1471 = vmatpush1.bf16.msra.mxu0 %v1452
        %1472 = vmatprep.subr.bf16.mxu0 0
        %1473 = vmatpush1.bf16.msra.mxu0 %v1451
        %1474 = vmatprep.subr.bf16.mxu0 0
        %1475 = vmatpush1.bf16.msra.mxu0 %v1450
        %1476 = vmatprep.subr.bf16.mxu0 0
        %1477 = vmatpush1.bf16.msra.mxu0 %v1449
        %1478 = vmatprep.subr.bf16.mxu0 0
        %1479 = vmatpush1.bf16.msra.mxu0 %v1448
        %1480 = vmatprep.subr.bf16.mxu0 0
        %1481 = vmatpush2.bf16.msra.mxu0 0
        %1482 = vmatprep.subr.bf16.mxu0 0
        %1483 = vmatpush2.bf16.msra.mxu0 0
        %1484 = vmatprep.subr.bf16.mxu0 0
        %1485 = vmatpush2.bf16.msra.mxu0 0
        %1486 = vmatprep.subr.bf16.mxu0 0
        %1487 = vmatpush2.bf16.msra.mxu0 0
        %1488 = vmatprep.subr.bf16.mxu0 0
        %1489 = vmatpush2.bf16.msra.mxu0 0
        %1490 = vmatprep.subr.bf16.mxu0 0
        %1491 = vmatpush2.bf16.msra.mxu0 0
        %1492 = vmatprep.subr.bf16.mxu0 0
        %1493 = vmatpush2.bf16.msra.mxu0 0
        %1494 = vmatprep.subr.bf16.mxu0 0
        %1495 = vmatpush2.bf16.msra.mxu0 0
        %1496 = vmatprep.mubr.bf16.mxu0 0
        %1497 = vmatmul.mubr.bf16.gmra.mxu0 %v1391
        %v1498 = vpop.f32.mrf.mxu0
        %v1499 = vadd.f32 0.0, %v1498
        %v1500 = vpop.f32.mrf.mxu0
        %v1501 = vpop.f32.mrf.mxu0
        %v1502 = vadd.f32 0.0, %v1501
        %v1503 = vpop.f32.mrf.mxu0
        %1504 = vmatprep.mubr.bf16.mxu0 0
        %1505 = vmatmul.mubr.bf16.gmra.mxu0 %v1392
        %v1506 = vpop.f32.mrf.mxu0
        %v1507 = vadd.f32 0.0, %v1506
        %v1508 = vpop.f32.mrf.mxu0
        %v1509 = vpop.f32.mrf.mxu0
        %v1510 = vadd.f32 0.0, %v1509
        %v1511 = vpop.f32.mrf.mxu0
        %1512 = vmatprep.mubr.bf16.mxu0 0
        %1513 = vmatmul.mubr.bf16.gmra.mxu0 %v1393
        %v1514 = vpop.f32.mrf.mxu0
        %v1515 = vadd.f32 0.0, %v1514
        %v1516 = vpop.f32.mrf.mxu0
        %v1517 = vpop.f32.mrf.mxu0
        %v1518 = vadd.f32 0.0, %v1517
        %v1519 = vpop.f32.mrf.mxu0
        %1520 = vmatprep.mubr.bf16.mxu0 0
        %1521 = vmatmul.mubr.bf16.gmra.mxu0 %v1394
        %v1522 = vpop.f32.mrf.mxu0
        %v1523 = vadd.f32 0.0, %v1522
        %v1524 = vpop.f32.mrf.mxu0
        %v1525 = vpop.f32.mrf.mxu0
        %v1526 = vadd.f32 0.0, %v1525
        %v1527 = vpop.f32.mrf.mxu0
        %1528 = vmatprep.mubr.bf16.mxu0 0
        %1529 = vmatmul.mubr.bf16.gmra.mxu0 %v1395
        %v1530 = vpop.f32.mrf.mxu0
        %v1531 = vadd.f32 0.0, %v1530
        %v1532 = vpop.f32.mrf.mxu0
        %v1533 = vpop.f32.mrf.mxu0
        %v1534 = vadd.f32 0.0, %v1533
        %v1535 = vpop.f32.mrf.mxu0
        %1536 = vmatprep.mubr.bf16.mxu0 0
        %1537 = vmatmul.mubr.bf16.gmra.mxu0 %v1396
        %v1538 = vpop.f32.mrf.mxu0
        %v1539 = vadd.f32 0.0, %v1538
        %v1540 = vpop.f32.mrf.mxu0
        %v1541 = vpop.f32.mrf.mxu0
        %v1542 = vadd.f32 0.0, %v1541
        %v1543 = vpop.f32.mrf.mxu0
        %1544 = vmatprep.mubr.bf16.mxu0 0
        %1545 = vmatmul.mubr.bf16.gmra.mxu0 %v1397
        %v1546 = vpop.f32.mrf.mxu0
        %v1547 = vadd.f32 0.0, %v1546
        %v1548 = vpop.f32.mrf.mxu0
        %v1549 = vpop.f32.mrf.mxu0
        %v1550 = vadd.f32 0.0, %v1549
        %v1551 = vpop.f32.mrf.mxu0
        %1552 = vmatprep.mubr.bf16.mxu0 0
        %1553 = vmatmul.mubr.bf16.gmra.mxu0 %v1398
        %v1554 = vpop.f32.mrf.mxu0
        %v1555 = vadd.f32 0.0, %v1554
        %v1556 = vpop.f32.mrf.mxu0
        %v1557 = vpop.f32.mrf.mxu0
        %v1558 = vadd.f32 0.0, %v1557
        %v1559 = vpop.f32.mrf.mxu0
        %1560 = vdwg.mxu0
        %v1577 = vunpack.c.l.b16 %v1375
        %v1578 = vunpack.c.l.b16 %v1376
        %v1579 = vunpack.c.l.b16 %v1377
        %v1580 = vunpack.c.l.b16 %v1378
        %v1581 = vunpack.c.l.b16 %v1379
        %v1582 = vunpack.c.l.b16 %v1380
        %v1583 = vunpack.c.l.b16 %v1381
        %v1584 = vunpack.c.l.b16 %v1382
        %v1585 = vunpack.c.l.b16 %v1383
        %v1586 = vunpack.c.l.b16 %v1384
        %v1587 = vunpack.c.l.b16 %v1385
        %v1588 = vunpack.c.l.b16 %v1386
        %v1589 = vunpack.c.l.b16 %v1387
        %v1590 = vunpack.c.l.b16 %v1388
        %v1591 = vunpack.c.l.b16 %v1389
        %v1592 = vunpack.c.l.b16 %v1390
        %v1593 = vpack.c.b16 %v1578, %v1577
        %v1594 = vpack.c.b16 %v1580, %v1579
        %v1595 = vpack.c.b16 %v1582, %v1581
        %v1596 = vpack.c.b16 %v1584, %v1583
        %v1597 = vpack.c.b16 %v1586, %v1585
        %v1598 = vpack.c.b16 %v1588, %v1587
        %v1599 = vpack.c.b16 %v1590, %v1589
        %v1600 = vpack.c.b16 %v1592, %v1591
        %1609 = vmatprep.subr.bf16.mxu0 0
        %1610 = vmatpush1.bf16.msra.mxu0 %v1600
        %1611 = vmatprep.subr.bf16.mxu0 0
        %1612 = vmatpush1.bf16.msra.mxu0 %v1599
        %1613 = vmatprep.subr.bf16.mxu0 0
        %1614 = vmatpush1.bf16.msra.mxu0 %v1598
        %1615 = vmatprep.subr.bf16.mxu0 0
        %1616 = vmatpush1.bf16.msra.mxu0 %v1597
        %1617 = vmatprep.subr.bf16.mxu0 0
        %1618 = vmatpush1.bf16.msra.mxu0 %v1596
        %1619 = vmatprep.subr.bf16.mxu0 0
        %1620 = vmatpush1.bf16.msra.mxu0 %v1595
        %1621 = vmatprep.subr.bf16.mxu0 0
        %1622 = vmatpush1.bf16.msra.mxu0 %v1594
        %1623 = vmatprep.subr.bf16.mxu0 0
        %1624 = vmatpush1.bf16.msra.mxu0 %v1593
        %1625 = vmatprep.subr.bf16.mxu0 0
        %1626 = vmatpush2.bf16.msra.mxu0 0
        %1627 = vmatprep.subr.bf16.mxu0 0
        %1628 = vmatpush2.bf16.msra.mxu0 0
        %1629 = vmatprep.subr.bf16.mxu0 0
        %1630 = vmatpush2.bf16.msra.mxu0 0
        %1631 = vmatprep.subr.bf16.mxu0 0
        %1632 = vmatpush2.bf16.msra.mxu0 0
        %1633 = vmatprep.subr.bf16.mxu0 0
        %1634 = vmatpush2.bf16.msra.mxu0 0
        %1635 = vmatprep.subr.bf16.mxu0 0
        %1636 = vmatpush2.bf16.msra.mxu0 0
        %1637 = vmatprep.subr.bf16.mxu0 0
        %1638 = vmatpush2.bf16.msra.mxu0 0
        %1639 = vmatprep.subr.bf16.mxu0 0
        %1640 = vmatpush2.bf16.msra.mxu0 0
        %1641 = vmatprep.mubr.bf16.mxu0 0
        %1642 = vmatmul.mubr.bf16.gmra.mxu0 %v1367
        %v1643 = vpop.f32.mrf.mxu0
        %v1644 = vadd.f32 %v1499, %v1643
        %v1645 = vpop.f32.mrf.mxu0
        %v1646 = vpop.f32.mrf.mxu0
        %v1647 = vadd.f32 %v1502, %v1646
        %v1648 = vpop.f32.mrf.mxu0
        %1649 = vmatprep.mubr.bf16.mxu0 0
        %1650 = vmatmul.mubr.bf16.gmra.mxu0 %v1368
        %v1651 = vpop.f32.mrf.mxu0
        %v1652 = vadd.f32 %v1507, %v1651
        %v1653 = vpop.f32.mrf.mxu0
        %v1654 = vpop.f32.mrf.mxu0
        %v1655 = vadd.f32 %v1510, %v1654
        %v1656 = vpop.f32.mrf.mxu0
        %1657 = vmatprep.mubr.bf16.mxu0 0
        %1658 = vmatmul.mubr.bf16.gmra.mxu0 %v1369
        %v1659 = vpop.f32.mrf.mxu0
        %v1660 = vadd.f32 %v1515, %v1659
        %v1661 = vpop.f32.mrf.mxu0
        %v1662 = vpop.f32.mrf.mxu0
        %v1663 = vadd.f32 %v1518, %v1662
        %v1664 = vpop.f32.mrf.mxu0
        %1665 = vmatprep.mubr.bf16.mxu0 0
        %1666 = vmatmul.mubr.bf16.gmra.mxu0 %v1370
        %v1667 = vpop.f32.mrf.mxu0
        %v1668 = vadd.f32 %v1523, %v1667
        %v1669 = vpop.f32.mrf.mxu0
        %v1670 = vpop.f32.mrf.mxu0
        %v1671 = vadd.f32 %v1526, %v1670
        %v1672 = vpop.f32.mrf.mxu0
        %1673 = vmatprep.mubr.bf16.mxu0 0
        %1674 = vmatmul.mubr.bf16.gmra.mxu0 %v1371
        %v1675 = vpop.f32.mrf.mxu0
        %v1676 = vadd.f32 %v1531, %v1675
        %v1677 = vpop.f32.mrf.mxu0
        %v1678 = vpop.f32.mrf.mxu0
        %v1679 = vadd.f32 %v1534, %v1678
        %v1680 = vpop.f32.mrf.mxu0
        %1681 = vmatprep.mubr.bf16.mxu0 0
        %1682 = vmatmul.mubr.bf16.gmra.mxu0 %v1372
        %v1683 = vpop.f32.mrf.mxu0
        %v1684 = vadd.f32 %v1539, %v1683
        %v1685 = vpop.f32.mrf.mxu0
        %v1686 = vpop.f32.mrf.mxu0
        %v1687 = vadd.f32 %v1542, %v1686
        %v1688 = vpop.f32.mrf.mxu0
        %1689 = vmatprep.mubr.bf16.mxu0 0
        %1690 = vmatmul.mubr.bf16.gmra.mxu0 %v1373
        %v1691 = vpop.f32.mrf.mxu0
        %v1692 = vadd.f32 %v1547, %v1691
        %v1693 = vpop.f32.mrf.mxu0
        %v1694 = vpop.f32.mrf.mxu0
        %v1695 = vadd.f32 %v1550, %v1694
        %v1696 = vpop.f32.mrf.mxu0
        %1697 = vmatprep.mubr.bf16.mxu0 0
        %1698 = vmatmul.mubr.bf16.gmra.mxu0 %v1374
        %v1699 = vpop.f32.mrf.mxu0
        %v1700 = vadd.f32 %v1555, %v1699
        %v1701 = vpop.f32.mrf.mxu0
        %v1702 = vpop.f32.mrf.mxu0
        %v1703 = vadd.f32 %v1558, %v1702
        %v1704 = vpop.f32.mrf.mxu0
        %1705 = vdwg.mxu0
        %v1706 = vpack.c.bf16 %v1352, %v1351
        %v1707 = vpack.c.bf16 %v1354, %v1353
        %v1708 = vpack.c.bf16 %v1356, %v1355
        %v1709 = vpack.c.bf16 %v1358, %v1357
        %v1710 = vpack.c.bf16 %v1360, %v1359
        %v1711 = vpack.c.bf16 %v1362, %v1361
        %v1712 = vpack.c.bf16 %v1364, %v1363
        %v1713 = vpack.c.bf16 %v1366, %v1365
        %s1714 = scalar_lea.vmem [#allocation7], 128
        %v1715 = vld [vmem:[%s1714] sm:$0xf]
        %v1716 = vld [vmem:[%s1714 + $0x4] sm:$0xf]
        %v1717 = vld [vmem:[%s1714 + $0x8] sm:$0xf]
        %v1718 = vld [vmem:[%s1714 + $0xc] sm:$0xf]
        %v1719 = vld [vmem:[%s1714 + $0x10] sm:$0xf]
        %v1720 = vld [vmem:[%s1714 + $0x14] sm:$0xf]
        %v1721 = vld [vmem:[%s1714 + $0x18] sm:$0xf]
        %v1722 = vld [vmem:[%s1714 + $0x1c] sm:$0xf]
        %v1723 = vld [vmem:[%s1714 + $0x20] sm:$0xf]
        %v1724 = vld [vmem:[%s1714 + $0x24] sm:$0xf]
        %v1725 = vld [vmem:[%s1714 + $0x28] sm:$0xf]
        %v1726 = vld [vmem:[%s1714 + $0x2c] sm:$0xf]
        %v1727 = vld [vmem:[%s1714 + $0x30] sm:$0xf]
        %v1728 = vld [vmem:[%s1714 + $0x34] sm:$0xf]
        %v1729 = vld [vmem:[%s1714 + $0x38] sm:$0xf]
        %v1730 = vld [vmem:[%s1714 + $0x3c] sm:$0xf]
        %v1747 = vunpack.c.l.b16 %v1715
        %v1748 = vunpack.c.l.b16 %v1716
        %v1749 = vunpack.c.l.b16 %v1717
        %v1750 = vunpack.c.l.b16 %v1718
        %v1751 = vunpack.c.l.b16 %v1719
        %v1752 = vunpack.c.l.b16 %v1720
        %v1753 = vunpack.c.l.b16 %v1721
        %v1754 = vunpack.c.l.b16 %v1722
        %v1755 = vunpack.c.l.b16 %v1723
        %v1756 = vunpack.c.l.b16 %v1724
        %v1757 = vunpack.c.l.b16 %v1725
        %v1758 = vunpack.c.l.b16 %v1726
        %v1759 = vunpack.c.l.b16 %v1727
        %v1760 = vunpack.c.l.b16 %v1728
        %v1761 = vunpack.c.l.b16 %v1729
        %v1762 = vunpack.c.l.b16 %v1730
        %v1763 = vpack.c.b16 %v1748, %v1747
        %v1764 = vpack.c.b16 %v1750, %v1749
        %v1765 = vpack.c.b16 %v1752, %v1751
        %v1766 = vpack.c.b16 %v1754, %v1753
        %v1767 = vpack.c.b16 %v1756, %v1755
        %v1768 = vpack.c.b16 %v1758, %v1757
        %v1769 = vpack.c.b16 %v1760, %v1759
        %v1770 = vpack.c.b16 %v1762, %v1761
        %1779 = vmatprep.subr.bf16.mxu0 0
        %1780 = vmatpush1.bf16.msra.mxu0 %v1770
        %1781 = vmatprep.subr.bf16.mxu0 0
        %1782 = vmatpush1.bf16.msra.mxu0 %v1769
        %1783 = vmatprep.subr.bf16.mxu0 0
        %1784 = vmatpush1.bf16.msra.mxu0 %v1768
        %1785 = vmatprep.subr.bf16.mxu0 0
        %1786 = vmatpush1.bf16.msra.mxu0 %v1767
        %1787 = vmatprep.subr.bf16.mxu0 0
        %1788 = vmatpush1.bf16.msra.mxu0 %v1766
        %1789 = vmatprep.subr.bf16.mxu0 0
        %1790 = vmatpush1.bf16.msra.mxu0 %v1765
        %1791 = vmatprep.subr.bf16.mxu0 0
        %1792 = vmatpush1.bf16.msra.mxu0 %v1764
        %1793 = vmatprep.subr.bf16.mxu0 0
        %1794 = vmatpush1.bf16.msra.mxu0 %v1763
        %1795 = vmatprep.subr.bf16.mxu0 0
        %1796 = vmatpush2.bf16.msra.mxu0 0
        %1797 = vmatprep.subr.bf16.mxu0 0
        %1798 = vmatpush2.bf16.msra.mxu0 0
        %1799 = vmatprep.subr.bf16.mxu0 0
        %1800 = vmatpush2.bf16.msra.mxu0 0
        %1801 = vmatprep.subr.bf16.mxu0 0
        %1802 = vmatpush2.bf16.msra.mxu0 0
        %1803 = vmatprep.subr.bf16.mxu0 0
        %1804 = vmatpush2.bf16.msra.mxu0 0
        %1805 = vmatprep.subr.bf16.mxu0 0
        %1806 = vmatpush2.bf16.msra.mxu0 0
        %1807 = vmatprep.subr.bf16.mxu0 0
        %1808 = vmatpush2.bf16.msra.mxu0 0
        %1809 = vmatprep.subr.bf16.mxu0 0
        %1810 = vmatpush2.bf16.msra.mxu0 0
        %1811 = vmatprep.mubr.bf16.mxu0 0
        %1812 = vmatmul.mubr.bf16.gmra.mxu0 %v1706
        %v1813 = vpop.f32.mrf.mxu0
        %v1814 = vadd.f32 0.0, %v1813
        %v1815 = vpop.f32.mrf.mxu0
        %v1816 = vpop.f32.mrf.mxu0
        %v1817 = vadd.f32 0.0, %v1816
        %v1818 = vpop.f32.mrf.mxu0
        %1819 = vmatprep.mubr.bf16.mxu0 0
        %1820 = vmatmul.mubr.bf16.gmra.mxu0 %v1707
        %v1821 = vpop.f32.mrf.mxu0
        %v1822 = vadd.f32 0.0, %v1821
        %v1823 = vpop.f32.mrf.mxu0
        %v1824 = vpop.f32.mrf.mxu0
        %v1825 = vadd.f32 0.0, %v1824
        %v1826 = vpop.f32.mrf.mxu0
        %1827 = vmatprep.mubr.bf16.mxu0 0
        %1828 = vmatmul.mubr.bf16.gmra.mxu0 %v1708
        %v1829 = vpop.f32.mrf.mxu0
        %v1830 = vadd.f32 0.0, %v1829
        %v1831 = vpop.f32.mrf.mxu0
        %v1832 = vpop.f32.mrf.mxu0
        %v1833 = vadd.f32 0.0, %v1832
        %v1834 = vpop.f32.mrf.mxu0
        %1835 = vmatprep.mubr.bf16.mxu0 0
        %1836 = vmatmul.mubr.bf16.gmra.mxu0 %v1709
        %v1837 = vpop.f32.mrf.mxu0
        %v1838 = vadd.f32 0.0, %v1837
        %v1839 = vpop.f32.mrf.mxu0
        %v1840 = vpop.f32.mrf.mxu0
        %v1841 = vadd.f32 0.0, %v1840
        %v1842 = vpop.f32.mrf.mxu0
        %1843 = vmatprep.mubr.bf16.mxu0 0
        %1844 = vmatmul.mubr.bf16.gmra.mxu0 %v1710
        %v1845 = vpop.f32.mrf.mxu0
        %v1846 = vadd.f32 0.0, %v1845
        %v1847 = vpop.f32.mrf.mxu0
        %v1848 = vpop.f32.mrf.mxu0
        %v1849 = vadd.f32 0.0, %v1848
        %v1850 = vpop.f32.mrf.mxu0
        %1851 = vmatprep.mubr.bf16.mxu0 0
        %1852 = vmatmul.mubr.bf16.gmra.mxu0 %v1711
        %v1853 = vpop.f32.mrf.mxu0
        %v1854 = vadd.f32 0.0, %v1853
        %v1855 = vpop.f32.mrf.mxu0
        %v1856 = vpop.f32.mrf.mxu0
        %v1857 = vadd.f32 0.0, %v1856
        %v1858 = vpop.f32.mrf.mxu0
        %1859 = vmatprep.mubr.bf16.mxu0 0
        %1860 = vmatmul.mubr.bf16.gmra.mxu0 %v1712
        %v1861 = vpop.f32.mrf.mxu0
        %v1862 = vadd.f32 0.0, %v1861
        %v1863 = vpop.f32.mrf.mxu0
        %v1864 = vpop.f32.mrf.mxu0
        %v1865 = vadd.f32 0.0, %v1864
        %v1866 = vpop.f32.mrf.mxu0
        %1867 = vmatprep.mubr.bf16.mxu0 0
        %1868 = vmatmul.mubr.bf16.gmra.mxu0 %v1713
        %v1869 = vpop.f32.mrf.mxu0
        %v1870 = vadd.f32 0.0, %v1869
        %v1871 = vpop.f32.mrf.mxu0
        %v1872 = vpop.f32.mrf.mxu0
        %v1873 = vadd.f32 0.0, %v1872
        %v1874 = vpop.f32.mrf.mxu0
        %1875 = vdwg.mxu0
        %v1876 = vadd.f32 %v1644, %v1814
        %v1877 = vadd.f32 %v1647, %v1817
        %v1878 = vadd.f32 %v1652, %v1822
        %v1879 = vadd.f32 %v1655, %v1825
        %v1880 = vadd.f32 %v1660, %v1830
        %v1881 = vadd.f32 %v1663, %v1833
        %v1882 = vadd.f32 %v1668, %v1838
        %v1883 = vadd.f32 %v1671, %v1841
        %v1884 = vadd.f32 %v1676, %v1846
        %v1885 = vadd.f32 %v1679, %v1849
        %v1886 = vadd.f32 %v1684, %v1854
        %v1887 = vadd.f32 %v1687, %v1857
        %v1888 = vadd.f32 %v1692, %v1862
        %v1889 = vadd.f32 %v1695, %v1865
        %v1890 = vadd.f32 %v1700, %v1870
        %v1891 = vadd.f32 %v1703, %v1873
        %v1892 = vld [vmem:[%s5] sm:$0x1]
        %v1894 = vlaneseq
        %v1895 = vshrl.u32 %v1894, 7
        %v1896 = vsub.s32 0, %v1895
        %v1897 = vrot.slane %v1892, %v1896
        %v1899 = vmul.f32 %v1876, %v1897
        %v1900 = vmul.f32 %v1877, %v1897
        %v1901 = vmul.f32 %v1878, %v1897
        %v1902 = vmul.f32 %v1879, %v1897
        %v1903 = vmul.f32 %v1880, %v1897
        %v1904 = vmul.f32 %v1881, %v1897
        %v1905 = vmul.f32 %v1882, %v1897
        %v1906 = vmul.f32 %v1883, %v1897
        %v1907 = vmul.f32 %v1884, %v1897
        %v1908 = vmul.f32 %v1885, %v1897
        %v1909 = vmul.f32 %v1886, %v1897
        %v1910 = vmul.f32 %v1887, %v1897
        %v1911 = vmul.f32 %v1888, %v1897
        %v1912 = vmul.f32 %v1889, %v1897
        %v1913 = vmul.f32 %v1890, %v1897
        %v1914 = vmul.f32 %v1891, %v1897
        %v1915 = vld [vmem:[%s6] sm:$0x1]
        %v1917 = vlaneseq
        %v1918 = vshrl.u32 %v1917, 7
        %v1919 = vsub.s32 0, %v1918
        %v1920 = vrot.slane %v1915, %v1919
        %v1922 = vadd.f32 %v1899, %v1920
        %v1923 = vadd.f32 %v1900, %v1920
        %v1924 = vadd.f32 %v1901, %v1920
        %v1925 = vadd.f32 %v1902, %v1920
        %v1926 = vadd.f32 %v1903, %v1920
        %v1927 = vadd.f32 %v1904, %v1920
        %v1928 = vadd.f32 %v1905, %v1920
        %v1929 = vadd.f32 %v1906, %v1920
        %v1930 = vadd.f32 %v1907, %v1920
        %v1931 = vadd.f32 %v1908, %v1920
        %v1932 = vadd.f32 %v1909, %v1920
        %v1933 = vadd.f32 %v1910, %v1920
        %v1934 = vadd.f32 %v1911, %v1920
        %v1935 = vadd.f32 %v1912, %v1920
        %v1936 = vadd.f32 %v1913, %v1920
        %v1937 = vadd.f32 %v1914, %v1920
        %v1938 = vadd.f32 %v1922, %v329
        %v1939 = vadd.f32 %v1923, %v330
        %v1940 = vadd.f32 %v1924, %v331
        %v1941 = vadd.f32 %v1925, %v332
        %v1942 = vadd.f32 %v1926, %v333
        %v1943 = vadd.f32 %v1927, %v334
        %v1944 = vadd.f32 %v1928, %v335
        %v1945 = vadd.f32 %v1929, %v336
        %v1946 = vadd.f32 %v1930, %v337
        %v1947 = vadd.f32 %v1931, %v338
        %v1948 = vadd.f32 %v1932, %v339
        %v1949 = vadd.f32 %v1933, %v340
        %v1950 = vadd.f32 %v1934, %v341
        %v1951 = vadd.f32 %v1935, %v342
        %v1952 = vadd.f32 %v1936, %v343
        %v1953 = vadd.f32 %v1937, %v344
        %v1954 = vmax.f32 %v1938, 0.0
        %v1955 = vmax.f32 %v1939, 0.0
        %v1956 = vmax.f32 %v1940, 0.0
        %v1957 = vmax.f32 %v1941, 0.0
        %v1958 = vmax.f32 %v1942, 0.0
        %v1959 = vmax.f32 %v1943, 0.0
        %v1960 = vmax.f32 %v1944, 0.0
        %v1961 = vmax.f32 %v1945, 0.0
        %v1962 = vmax.f32 %v1946, 0.0
        %v1963 = vmax.f32 %v1947, 0.0
        %v1964 = vmax.f32 %v1948, 0.0
        %v1965 = vmax.f32 %v1949, 0.0
        %v1966 = vmax.f32 %v1950, 0.0
        %v1967 = vmax.f32 %v1951, 0.0
        %v1968 = vmax.f32 %v1952, 0.0
        %v1969 = vmax.f32 %v1953, 0.0
        %1970 = vst [vmem:[%s325] sm:$0xff] %v1954
        %1971 = vst [vmem:[%s325 + $0x8] sm:$0xff] %v1955
        %1972 = vst [vmem:[%s325 + $0x10] sm:$0xff] %v1956
        %1973 = vst [vmem:[%s325 + $0x18] sm:$0xff] %v1957
        %1974 = vst [vmem:[%s325 + $0x20] sm:$0xff] %v1958
        %1975 = vst [vmem:[%s325 + $0x28] sm:$0xff] %v1959
        %1976 = vst [vmem:[%s325 + $0x30] sm:$0xff] %v1960
        %1977 = vst [vmem:[%s325 + $0x38] sm:$0xff] %v1961
        %1978 = vst [vmem:[%s325 + $0x40] sm:$0xff] %v1962
        %1979 = vst [vmem:[%s325 + $0x48] sm:$0xff] %v1963
        %1980 = vst [vmem:[%s325 + $0x50] sm:$0xff] %v1964
        %1981 = vst [vmem:[%s325 + $0x58] sm:$0xff] %v1965
        %1982 = vst [vmem:[%s325 + $0x60] sm:$0xff] %v1966
        %1983 = vst [vmem:[%s325 + $0x68] sm:$0xff] %v1967
        %1984 = vst [vmem:[%s325 + $0x70] sm:$0xff] %v1968
        %1985 = vst [vmem:[%s325 + $0x78] sm:$0xff] %v1969
        %s1986 = sand.u32 %s185, 1
        %s1987 = scalar_lea.sflag [#allocation4], %s1986
        %s1988 = sand.u32 %s185, 1
        %s1989 = smul.addr %s1988, 128
        %s1990 = scalar_lea.vmem [#allocation8], %s1989
        // Predicated region
        $region61: #{tpu_custom_call.1} parent=47 // pred_check
          %p1991 = pneg %p195
        $region62: #{tpu_custom_call.1} parent=47 // pred_check_branch
          %1993 = sbr.rel (%p1991) target = $region64
        $region63: #{tpu_custom_call.1} parent=47 // pred_region
          %s1994 = smul.u32 16, %s25
          %s1996 = ssub.s32 2048, 2048
          %1997 = vsyncadd %s1987, %s1996
          %s1998 = smul.addr %s1994, 128
          %s1999 = scalar_lea.hbm %s7, %s1998
          %s2000 = sshll.u32 %s1990, 4
          %s2001 = int_to_ptr.vmem [resolvable:$true] %s2000
          %2006 = dma.vmem_to_hbm [thread:$0]  %s2001, 2048, %s1999, %s1987, 128, 128, 8
        $region64: #{tpu_custom_call.1} parent=47 // pred_fallthru
          _
      $region48: #{tpu_custom_call.1} parent=5 // pred_fallthru
        _
      %p2007 = scmp.le.s32.totalorder 2, %s20
      // Predicated region
      $region65: #{tpu_custom_call.1} parent=5 // pred_check
        %p2008 = pneg %p2007
      $region66: #{tpu_custom_call.1} parent=5 // pred_check_branch
        %2010 = sbr.rel (%p2008) target = $region68
      $region67: #{tpu_custom_call.1} parent=5 // pred_region
        %s2011 = ssub.s32 %s20, 2
        // Predicated region
        $region69: #{tpu_custom_call.1} parent=67 // pred_check
          %p2012 = pneg %p201
        $region70: #{tpu_custom_call.1} parent=67 // pred_check_branch
          %2014 = sbr.rel (%p2012) target = $region72
        $region71: #{tpu_custom_call.1} parent=67 // pred_region
          %s2015 = sand.u32 %s186, 1
          %s2016 = scalar_lea.sflag [#allocation4], %s2015
          %s2017 = sand.u32 %s186, 1
          %s2018 = smul.addr %s2017, 128
          %s2019 = scalar_lea.vmem [#allocation8], %s2018
          %2020 = dma.done %s2016, 2048
        $region72: #{tpu_custom_call.1} parent=67 // pred_fallthru
          _
      $region68: #{tpu_custom_call.1} parent=5 // pred_fallthru
        _
    $region6: #{tpu_custom_call.1} parent=1 // loop_footer
      %s24 = sadd.s32 1, %s20
    $region7: #{tpu_custom_call.1} parent=1 // loop_footer_branch
      %19 = sbr.rel target = $region3
    $region8: #{tpu_custom_call.1} parent=1 // loop_exit
      _
    %2021 = vsyncpa [#allocation3], 1
    %s2022 = scalar_lea.sflag [#allocation3], 1
    %2023 = vsyncpa %s2022, 1
    %2024 = vsyncpa [#allocation6], 1
    %2025 = vsyncpa [#allocation4], 1
    %s2026 = scalar_lea.sflag [#allocation4], 1
    %2027 = vsyncpa %s2026, 1

</llo_original>
